<compile_context>
chip_gen: v6e
topology: v6e:2x2x1
jax: 0.10.0
libtpu: 0.0.40
codegen_flags: <defaults>
</compile_context>

<pallas_src>
import functools

import jax
import jax.numpy as jnp
from jax.experimental import pallas as pl
from jax.experimental.pallas import tpu as pltpu

LN_EPS = 1e-12  # BERT LayerNorm eps (requires f32 statistics)


# --------------------------- in-kernel helpers ---------------------------

def _layernorm(x, g, b):
    # x, g, b are float32; statistics stay in float32.
    mu = jnp.mean(x, axis=-1, keepdims=True)
    var = jnp.mean(jnp.square(x - mu), axis=-1, keepdims=True)
    return (x - mu) * jax.lax.rsqrt(var + LN_EPS) * g + b


def _gelu_exact(x):
    # HF BERT "gelu" (erf-based, exact), computed in float32.
    return 0.5 * x * (1.0 + jax.lax.erf(x * (1.0 / jnp.sqrt(jnp.float32(2.0)))))


def _vmem_limit_bytes():
    """Generation-dependent VMEM budget: ~100 MiB on v5e/v6e (128 MiB physical),
    ~44 MiB on v7x (64 MiB physical), leaving compiler-scratch headroom."""
    mib = 1024 * 1024
    try:
        cap = getattr(pltpu.get_tpu_info(), "vmem_capacity_bytes", 64 * mib)
    except Exception:  # be robust if the query is unavailable
        cap = 64 * mib
    return int(min(cap - 20 * mib, 100 * mib))


# --------------------------- fused BERT kernel (grid=(L,)) ---------------------------

def bert_kernel(emb_ref, maskb_ref, eg_ref, eb_ref,
                wqkv_ref, bqkv_ref, wo_ref, wi_ref, wd_ref, bi_ref, vec_ref,
                pw_ref, pb_ref, cw_ref, cb_ref,
                o_ref, h_ref, ctx_ref, *, num_heads):
    """Grid axis 0 iterates over encoder layers.

    h_ref   : VMEM scratch (B,S,H) f32  — resident running hidden state.
    ctx_ref : VMEM scratch (B*S,H) bf16 — per-layer head-context assembly slab.
    o_ref   : (B, OUT_PAD) f32 logits, written only on the last layer iteration.
    """
    layer = pl.program_id(0)
    n_layers = pl.num_programs(0)

    # Seed the resident hidden state with the embedding LayerNorm on layer 0.
    @pl.when(layer == 0)
    def _():
        e = emb_ref[...].astype(jnp.float32)          # bf16 transport, f32 stats
        h_ref[...] = _layernorm(e, eg_ref[...], eb_ref[...])

    x = h_ref[...]                                    # (B, S, H) f32, resident
    B, S, H = x.shape
    hd = H // num_heads
    x2d = x.reshape(B * S, H)
    xb = x2d.astype(jnp.bfloat16)

    # Packed per-layer bias / LayerNorm vectors: rows of (6, H).
    vec = vec_ref[...]
    bo, ln1_g, ln1_b = vec[0:1, :], vec[1:2, :], vec[2:3, :]
    bd, ln2_g, ln2_b = vec[3:4, :], vec[4:5, :], vec[5:6, :]

    # ---- fused QKV projection: one full-depth (K=H, N=3H) bf16 MXU matmul ----
    # (the 1/sqrt(head_dim) scale is already folded into the Q weight/bias columns)
    qkv = jnp.dot(xb, wqkv_ref[...], preferred_element_type=jnp.float32) + bqkv_ref[...]
    q2d = qkv[:, :H].astype(jnp.bfloat16)
    k2d = qkv[:, H:2 * H].astype(jnp.bfloat16)
    v2d = qkv[:, 2 * H:].astype(jnp.bfloat16)

    maskb = maskb_ref[...]                            # (B, 1, S) additive mask bias, f32

    # Per-head attention; each head's context is stored straight into ctx_ref so no
    # lane-axis concat is needed and per-head live ranges are bounded.
    # TODO(synk): production shapes -> heads on a grid axis + flash-style KV tiling.
    for h in range(num_heads):
        lo = h * hd
        qh = q2d[:, lo:lo + hd].reshape(B, S, hd)
        kh = k2d[:, lo:lo + hd].reshape(B, S, hd)
        vh = v2d[:, lo:lo + hd].reshape(B, S, hd)
        s = jnp.einsum('bqd,bkd->bqk', qh, kh, preferred_element_type=jnp.float32)
        s = s + maskb
        s = s - jnp.max(s, axis=-1, keepdims=True)
        p = jnp.exp(s)
        # exact reciprocal on the (B,S,1) denominator (parity; ~free at this size)
        p = p * pl.reciprocal(jnp.sum(p, axis=-1, keepdims=True), approx=False)
        ctx = jnp.einsum('bqk,bkd->bqd', p.astype(jnp.bfloat16), vh,
                         preferred_element_type=jnp.float32)
        ctx_ref[:, lo:lo + hd] = ctx.reshape(B * S, hd).astype(jnp.bfloat16)

    # ONE full-depth (K=H) attention output projection over all heads.
    attn2d = jnp.dot(ctx_ref[...], wo_ref[...], preferred_element_type=jnp.float32) + bo

    # Add & LayerNorm 1 (f32)
    x1 = _layernorm(attn2d + x2d, ln1_g, ln1_b)

    # Feed-forward: intermediate GELU -> output dense (bf16 matmuls, f32 accum)
    inter = _gelu_exact(jnp.dot(x1.astype(jnp.bfloat16), wi_ref[...],
                                preferred_element_type=jnp.float32) + bi_ref[...])
    ffn = jnp.dot(inter.astype(jnp.bfloat16), wd_ref[...],
                  preferred_element_type=jnp.float32) + bd

    # Add & LayerNorm 2 -> new resident hidden state
    h_new = _layernorm(ffn + x1, ln2_g, ln2_b)
    h3 = h_new.reshape(B, S, H)
    h_ref[...] = h3

    # Fused pooler + classifier on the final layer (only output of the kernel).
    @pl.when(layer == n_layers - 1)
    def _():
        cls = h3[:, 0:1, :].reshape(B, H)             # [CLS] token
        pooled = jnp.tanh(jnp.dot(cls.astype(jnp.bfloat16), pw_ref[...],
                                  preferred_element_type=jnp.float32) + pb_ref[...])
        o_ref[...] = jnp.dot(pooled.astype(jnp.bfloat16), cw_ref[...],
                             preferred_element_type=jnp.float32) + cb_ref[...]


# --------------------------- wrapper ---------------------------

def run_bert(emb_bf16, maskb, params, num_heads):
    B, S, H = emb_bf16.shape
    enc = params['enc']
    L, _, H3 = enc['wqkv'].shape
    I = enc['wi'].shape[-1]
    out_pad = params['cls_w'].shape[1]

    fixed3 = lambda l: (0, 0, 0)
    fixed2 = lambda l: (0, 0)
    per_layer = lambda l: (l, 0, 0)

    in_specs = [
        pl.BlockSpec((B, S, H), fixed3),            # embeddings (bf16, read at layer 0)
        pl.BlockSpec((B, 1, S), fixed3),            # additive attention-mask bias
        pl.BlockSpec((1, H), fixed2),               # embedding LN gamma
        pl.BlockSpec((1, H), fixed2),               # embedding LN beta
        pl.BlockSpec((None, H, H3), per_layer),     # fused QKV weight (bf16, Q pre-scaled)
        pl.BlockSpec((None, 1, H3), per_layer),     # fused QKV bias   (f32)
        pl.BlockSpec((None, H, H), per_layer),      # attn output weight (bf16)
        pl.BlockSpec((None, H, I), per_layer),      # intermediate weight (bf16)
        pl.BlockSpec((None, I, H), per_layer),      # FFN output weight (bf16)
        pl.BlockSpec((None, 1, I), per_layer),      # intermediate bias
        pl.BlockSpec((None, 6, H), per_layer),      # packed [bo, ln1_g, ln1_b, bd, ln2_g, ln2_b]
        pl.BlockSpec((H, H), fixed2),               # pooler weight (bf16)
        pl.BlockSpec((1, H), fixed2),               # pooler bias
        pl.BlockSpec((H, out_pad), fixed2),         # classifier weight (bf16, lane-padded)
        pl.BlockSpec((1, out_pad), fixed2),         # classifier bias
    ]
    out_specs = pl.BlockSpec((B, out_pad), fixed2)  # lane-dense logits slab

    kern = functools.partial(bert_kernel, num_heads=num_heads)
    return pl.pallas_call(
        kern,
        grid=(L,),
        in_specs=in_specs,
        out_specs=out_specs,
        out_shape=jax.ShapeDtypeStruct((B, out_pad), jnp.float32),
        scratch_shapes=[
            pltpu.VMEM((B, S, H), jnp.float32),     # resident hidden state
            pltpu.VMEM((B * S, H), jnp.bfloat16),   # head-context assembly slab
        ],
        compiler_params=pltpu.CompilerParams(
            # Layer axis has a sequential data dependency -> arbitrary.
            # TODO(synk): add a leading 'parallel' row-tile axis at production shapes
            #             to use v7x's second TensorCore.
            dimension_semantics=("arbitrary",),
            vmem_limit_bytes=_vmem_limit_bytes(),
        ),
    )(emb_bf16, maskb, params['emb_ln_g'], params['emb_ln_b'],
      enc['wqkv'], enc['bqkv'], enc['wo'], enc['wi'], enc['wd'], enc['bi'], enc['vec6'],
      params['pooler_w'], params['pooler_b'], params['cls_w'], params['cls_b'])


def bert_classifier_forward(params, input_ids, attention_mask, *, num_heads, out_dim):
    B, S = input_ids.shape
    # Embedding lookups (gather glue stays in plain JAX).  token_type_ids default to 0
    # (matches the PyTorch call with only input_ids / attention_mask).
    emb = (jnp.take(params['word_emb'], input_ids, axis=0)
           + params['pos_emb'][None, :S, :]
           + params['type_emb'][0][None, None, :]).astype(jnp.float32)

    # HF-style extended attention mask: (1 - mask) * -10000, broadcast over queries.
    if attention_mask is None:
        attention_mask = jnp.ones((B, S), jnp.int32)
    maskb = (1.0 - attention_mask.astype(jnp.float32))[:, None, :] * -10000.0

    logits_pad = run_bert(emb.astype(jnp.bfloat16), maskb, params, num_heads)
    return logits_pad[:, :out_dim]                   # slice lane-padded output on host


# --------------------------- parameter init ---------------------------

def init_params(key, *, vocab, max_pos, hidden, heads, inter, layers, out_dim, out_pad=128):
    kiter = iter(jax.random.split(key, 5 + 6 * layers))

    def w(shape):
        return 0.02 * jax.random.normal(next(kiter), shape, jnp.float32)

    zeros = lambda s: jnp.zeros(s, jnp.float32)
    ones = lambda s: jnp.ones(s, jnp.float32)
    bf16 = lambda a: a.astype(jnp.bfloat16)

    params = {
        'word_emb': w((vocab, hidden)),
        'pos_emb': w((max_pos, hidden)),
        'type_emb': w((2, hidden)),
        'emb_ln_g': ones((1, hidden)),
        'emb_ln_b': zeros((1, hidden)),
        'pooler_w': bf16(w((hidden, hidden))),
        'pooler_b': zeros((1, hidden)),
        # Classifier weight padded to a lane-dense 128-wide output slab.
        'cls_w': bf16(jnp.zeros((hidden, out_pad), jnp.float32)
                      .at[:, :out_dim].set(w((hidden, out_dim)))),
        'cls_b': zeros((1, out_pad)),
    }

    # 1/sqrt(head_dim) folded into the Q weight columns once (weight prep, not per-call).
    scale = float(hidden // heads) ** -0.5
    wqkv, wo, wi, wd = [], [], [], []
    for _ in range(layers):
        wq, wk, wv = w((hidden, hidden)), w((hidden, hidden)), w((hidden, hidden))
        wqkv.append(jnp.concatenate([wq * scale, wk, wv], axis=1))   # (H, 3H)
        wo.append(w((hidden, hidden)))
        wi.append(w((hidden, inter)))
        wd.append(w((inter, hidden)))

    # Packed per-layer small vectors: rows = [bo, ln1_g, ln1_b, bd, ln2_g, ln2_b].
    vec_layer = jnp.stack([zeros((hidden,)), ones((hidden,)), zeros((hidden,)),
                           zeros((hidden,)), ones((hidden,)), zeros((hidden,))])
    params['enc'] = {
        'wqkv': bf16(jnp.stack(wqkv)),                # (L, H, 3H) bf16, Q pre-scaled
        # NOTE: when importing a real checkpoint the Q bias columns must carry the same
        #       1/sqrt(head_dim) pre-scale; zeros here make it a no-op.
        'bqkv': zeros((layers, 1, 3 * hidden)),
        'wo':   bf16(jnp.stack(wo)),                  # (L, H, H) bf16
        'wi':   bf16(jnp.stack(wi)),                  # (L, H, I) bf16
        'wd':   bf16(jnp.stack(wd)),                  # (L, I, H) bf16
        'bi':   zeros((layers, 1, inter)),
        'vec6': jnp.stack([vec_layer] * layers),      # (L, 6, H) f32
    }
    return params


# --------------------------- main ---------------------------

if __name__ == "__main__":
    # Small BERT config consistent with the module's forward:
    B, S = 2, 8
    VOCAB, MAX_POS, HIDDEN, HEADS, INTER, LAYERS, OUT_DIM = 128, 64, 32, 4, 64, 2, 2

    root = jax.random.PRNGKey(0)
    k_params, k_ids = jax.random.split(root)

    params = init_params(k_params, vocab=VOCAB, max_pos=MAX_POS, hidden=HIDDEN,
                         heads=HEADS, inter=INTER, layers=LAYERS, out_dim=OUT_DIM)

    input_ids = jax.random.randint(k_ids, (B, S), 0, VOCAB, dtype=jnp.int32)
    attention_mask = jnp.ones((B, S), jnp.int32).at[1, 6:].set(0)  # pad tail of sample 1

    logits = bert_classifier_forward(params, input_ids, attention_mask,
                                     num_heads=HEADS, out_dim=OUT_DIM)
    jax.block_until_ready(logits)
    assert logits.shape == (B, OUT_DIM) and logits.dtype == jnp.float32
    print("KERNEL_OK")
</pallas_src>

<mosaic_0001>
module attributes {stable_mosaic.version = 11 : i64} {
  func.func @bert_kernel(%arg0: i32, %arg1: memref<2x8x32xbf16, #tpu.memory_space<vmem>>, %arg2: memref<2x1x8xf32, #tpu.memory_space<vmem>>, %arg3: memref<1x32xf32, #tpu.memory_space<vmem>>, %arg4: memref<1x32xf32, #tpu.memory_space<vmem>>, %arg5: memref<1x32x96xbf16, #tpu.memory_space<vmem>>, %arg6: memref<1x1x96xf32, #tpu.memory_space<vmem>>, %arg7: memref<1x32x32xbf16, #tpu.memory_space<vmem>>, %arg8: memref<1x32x64xbf16, #tpu.memory_space<vmem>>, %arg9: memref<1x64x32xbf16, #tpu.memory_space<vmem>>, %arg10: memref<1x1x64xf32, #tpu.memory_space<vmem>>, %arg11: memref<1x6x32xf32, #tpu.memory_space<vmem>>, %arg12: memref<32x32xbf16, #tpu.memory_space<vmem>>, %arg13: memref<1x32xf32, #tpu.memory_space<vmem>>, %arg14: memref<32x128xbf16, #tpu.memory_space<vmem>>, %arg15: memref<1x128xf32, #tpu.memory_space<vmem>>, %arg16: memref<2x128xf32, #tpu.memory_space<vmem>>, %arg17: memref<2x8x32xf32, #tpu.memory_space<vmem>>, %arg18: memref<16x32xbf16, #tpu.memory_space<vmem>>) attributes {dimension_semantics = [#tpu.dimension_semantics<arbitrary>], iteration_bounds = array<i64: 2>, scalar_prefetch = 0 : i64, scratch_operands = 2 : i64, tpu.core_type = #tpu.core_type<tc>, window_params = [{pipeline_mode = #tpu.pipeline_mode<synchronous>, transform_indices = @transform_0, window_bounds = array<i64: 2, 8, 32>}, {pipeline_mode = #tpu.pipeline_mode<synchronous>, transform_indices = @transform_1, window_bounds = array<i64: 2, 1, 8>}, {pipeline_mode = #tpu.pipeline_mode<synchronous>, transform_indices = @transform_2, window_bounds = array<i64: 1, 32>}, {pipeline_mode = #tpu.pipeline_mode<synchronous>, transform_indices = @transform_3, window_bounds = array<i64: 1, 32>}, {transform_indices = @transform_4, window_bounds = array<i64: 1, 32, 96>}, {transform_indices = @transform_5, window_bounds = array<i64: 1, 1, 96>}, {transform_indices = @transform_6, window_bounds = array<i64: 1, 32, 32>}, {transform_indices = @transform_7, window_bounds = array<i64: 1, 32, 64>}, {transform_indices = @transform_8, window_bounds = array<i64: 1, 64, 32>}, {transform_indices = @transform_9, window_bounds = array<i64: 1, 1, 64>}, {transform_indices = @transform_10, window_bounds = array<i64: 1, 6, 32>}, {pipeline_mode = #tpu.pipeline_mode<synchronous>, transform_indices = @transform_11, window_bounds = array<i64: 32, 32>}, {pipeline_mode = #tpu.pipeline_mode<synchronous>, transform_indices = @transform_12, window_bounds = array<i64: 1, 32>}, {pipeline_mode = #tpu.pipeline_mode<synchronous>, transform_indices = @transform_13, window_bounds = array<i64: 32, 128>}, {pipeline_mode = #tpu.pipeline_mode<synchronous>, transform_indices = @transform_14, window_bounds = array<i64: 1, 128>}, {pipeline_mode = #tpu.pipeline_mode<synchronous>, transform_indices = @transform_15, window_bounds = array<i64: 2, 128>}]} {
    %c0_i32 = arith.constant 0 : i32
    %0 = arith.cmpi eq, %arg0, %c0_i32 : i32
    %1 = arith.extui %0 : i1 to i32
    %c0_i32_0 = arith.constant 0 : i32
    %2 = arith.cmpi ne, %1, %c0_i32_0 : i32
    scf.if %2 {
      %c0_71 = arith.constant 0 : index
      %c0_72 = arith.constant 0 : index
      %c0_73 = arith.constant 0 : index
      %205 = vector.load %arg1[%c0_71, %c0_72, %c0_73] : memref<2x8x32xbf16, #tpu.memory_space<vmem>>, vector<2x8x32xbf16>
      %206 = arith.extf %205 : vector<2x8x32xbf16> to vector<2x8x32xf32>
      %c0_74 = arith.constant 0 : index
      %c0_75 = arith.constant 0 : index
      %207 = vector.load %arg3[%c0_74, %c0_75] : memref<1x32xf32, #tpu.memory_space<vmem>>, vector<1x32xf32>
      %c0_76 = arith.constant 0 : index
      %c0_77 = arith.constant 0 : index
      %208 = vector.load %arg4[%c0_76, %c0_77] : memref<1x32xf32, #tpu.memory_space<vmem>>, vector<1x32xf32>
      %cst_78 = arith.constant dense<0.000000e+00> : vector<2x8xf32>
      %209 = vector.multi_reduction <add>, %206, %cst_78 [2] : vector<2x8x32xf32> to vector<2x8xf32>
      %210 = vector.shape_cast %209 : vector<2x8xf32> to vector<2x8x1xf32>
      %cst_79 = arith.constant 3.200000e+01 : f32
      %211 = vector.broadcast %cst_79 : f32 to vector<2x8x1xf32>
      %212 = arith.divf %210, %211 : vector<2x8x1xf32>
      %213 = vector.broadcast %212 : vector<2x8x1xf32> to vector<2x8x32xf32>
      %214 = arith.subf %206, %213 : vector<2x8x32xf32>
      %215 = arith.mulf %214, %214 : vector<2x8x32xf32>
      %cst_80 = arith.constant dense<0.000000e+00> : vector<2x8xf32>
      %216 = vector.multi_reduction <add>, %215, %cst_80 [2] : vector<2x8x32xf32> to vector<2x8xf32>
      %217 = vector.shape_cast %216 : vector<2x8xf32> to vector<2x8x1xf32>
      %cst_81 = arith.constant 3.200000e+01 : f32
      %218 = vector.broadcast %cst_81 : f32 to vector<2x8x1xf32>
      %219 = arith.divf %217, %218 : vector<2x8x1xf32>
      %220 = vector.broadcast %212 : vector<2x8x1xf32> to vector<2x8x32xf32>
      %221 = arith.subf %206, %220 : vector<2x8x32xf32>
      %cst_82 = arith.constant 9.99999996E-13 : f32
      %222 = vector.broadcast %cst_82 : f32 to vector<2x8x1xf32>
      %223 = arith.addf %219, %222 : vector<2x8x1xf32>
      %224 = math.rsqrt %223 : vector<2x8x1xf32>
      %225 = vector.broadcast %224 : vector<2x8x1xf32> to vector<2x8x32xf32>
      %226 = arith.mulf %221, %225 : vector<2x8x32xf32>
      %227 = vector.shape_cast %207 : vector<1x32xf32> to vector<1x1x32xf32>
      %228 = vector.broadcast %227 : vector<1x1x32xf32> to vector<2x8x32xf32>
      %229 = arith.mulf %226, %228 : vector<2x8x32xf32>
      %230 = vector.shape_cast %208 : vector<1x32xf32> to vector<1x1x32xf32>
      %231 = vector.broadcast %230 : vector<1x1x32xf32> to vector<2x8x32xf32>
      %232 = arith.addf %229, %231 : vector<2x8x32xf32>
      %c0_83 = arith.constant 0 : index
      %c0_84 = arith.constant 0 : index
      %c0_85 = arith.constant 0 : index
      %233 = vector.load %arg17[%c0_83, %c0_84, %c0_85] : memref<2x8x32xf32, #tpu.memory_space<vmem>>, vector<2x8x32xf32>
      tpu.vector_store %arg17[%c0_83, %c0_84, %c0_85], %232 {strides = array<i32>} : memref<2x8x32xf32, #tpu.memory_space<vmem>>, vector<2x8x32xf32>,
    } else {
    }
    %c0 = arith.constant 0 : index
    %c0_1 = arith.constant 0 : index
    %c0_2 = arith.constant 0 : index
    %3 = vector.load %arg17[%c0, %c0_1, %c0_2] : memref<2x8x32xf32, #tpu.memory_space<vmem>>, vector<2x8x32xf32>
    %4 = vector.shape_cast %3 : vector<2x8x32xf32> to vector<16x32xf32>
    %5 = arith.truncf %4 : vector<16x32xf32> to vector<16x32xbf16>
    %c0_3 = arith.constant 0 : index
    %c0_4 = arith.constant 0 : index
    %c0_5 = arith.constant 0 : index
    %6 = vector.load %arg11[%c0_3, %c0_4, %c0_5] : memref<1x6x32xf32, #tpu.memory_space<vmem>>, vector<1x6x32xf32>
    %7 = vector.shape_cast %6 : vector<1x6x32xf32> to vector<6x32xf32>
    %8 = vector.extract_strided_slice %7 {offsets = [0, 0], sizes = [1, 32], strides = [1, 1]} : vector<6x32xf32> to vector<1x32xf32>
    %9 = vector.extract_strided_slice %7 {offsets = [1, 0], sizes = [1, 32], strides = [1, 1]} : vector<6x32xf32> to vector<1x32xf32>
    %10 = vector.extract_strided_slice %7 {offsets = [2, 0], sizes = [1, 32], strides = [1, 1]} : vector<6x32xf32> to vector<1x32xf32>
    %11 = vector.extract_strided_slice %7 {offsets = [3, 0], sizes = [1, 32], strides = [1, 1]} : vector<6x32xf32> to vector<1x32xf32>
    %12 = vector.extract_strided_slice %7 {offsets = [4, 0], sizes = [1, 32], strides = [1, 1]} : vector<6x32xf32> to vector<1x32xf32>
    %13 = vector.extract_strided_slice %7 {offsets = [5, 0], sizes = [1, 32], strides = [1, 1]} : vector<6x32xf32> to vector<1x32xf32>
    %c0_6 = arith.constant 0 : index
    %c0_7 = arith.constant 0 : index
    %c0_8 = arith.constant 0 : index
    %14 = vector.load %arg5[%c0_6, %c0_7, %c0_8] : memref<1x32x96xbf16, #tpu.memory_space<vmem>>, vector<1x32x96xbf16>
    %15 = vector.shape_cast %14 : vector<1x32x96xbf16> to vector<32x96xbf16>
    %cst = arith.constant dense<0.000000e+00> : vector<16x96xf32>
    %16 = tpu.matmul %5, %15, %cst {dimension_numbers = #tpu.dot_dimension_numbers<[1], [0], [0], [1], [0, 0, 1, 1], [], []>} : vector<16x32xbf16>, vector<32x96xbf16>, vector<16x96xf32> -> vector<16x96xf32>
    %c0_9 = arith.constant 0 : index
    %c0_10 = arith.constant 0 : index
    %c0_11 = arith.constant 0 : index
    %17 = vector.load %arg6[%c0_9, %c0_10, %c0_11] : memref<1x1x96xf32, #tpu.memory_space<vmem>>, vector<1x1x96xf32>
    %18 = vector.shape_cast %17 : vector<1x1x96xf32> to vector<1x96xf32>
    %19 = vector.broadcast %18 : vector<1x96xf32> to vector<16x96xf32>
    %20 = arith.addf %16, %19 : vector<16x96xf32>
    %21 = vector.extract_strided_slice %20 {offsets = [0, 0], sizes = [16, 32], strides = [1, 1]} : vector<16x96xf32> to vector<16x32xf32>
    %22 = arith.truncf %21 : vector<16x32xf32> to vector<16x32xbf16>
    %23 = vector.extract_strided_slice %20 {offsets = [0, 32], sizes = [16, 32], strides = [1, 1]} : vector<16x96xf32> to vector<16x32xf32>
    %24 = arith.truncf %23 : vector<16x32xf32> to vector<16x32xbf16>
    %25 = vector.extract_strided_slice %20 {offsets = [0, 64], sizes = [16, 32], strides = [1, 1]} : vector<16x96xf32> to vector<16x32xf32>
    %26 = arith.truncf %25 : vector<16x32xf32> to vector<16x32xbf16>
    %c0_12 = arith.constant 0 : index
    %c0_13 = arith.constant 0 : index
    %c0_14 = arith.constant 0 : index
    %27 = vector.load %arg2[%c0_12, %c0_13, %c0_14] : memref<2x1x8xf32, #tpu.memory_space<vmem>>, vector<2x1x8xf32>
    %28 = vector.extract_strided_slice %22 {offsets = [0, 0], sizes = [16, 8], strides = [1, 1]} : vector<16x32xbf16> to vector<16x8xbf16>
    %29 = vector.shape_cast %28 : vector<16x8xbf16> to vector<2x8x8xbf16>
    %30 = vector.extract_strided_slice %24 {offsets = [0, 0], sizes = [16, 8], strides = [1, 1]} : vector<16x32xbf16> to vector<16x8xbf16>
    %31 = vector.shape_cast %30 : vector<16x8xbf16> to vector<2x8x8xbf16>
    %32 = vector.extract_strided_slice %26 {offsets = [0, 0], sizes = [16, 8], strides = [1, 1]} : vector<16x32xbf16> to vector<16x8xbf16>
    %33 = vector.shape_cast %32 : vector<16x8xbf16> to vector<2x8x8xbf16>
    "tpu.trace_start"() <{level = 10 : i32, message = "bqd,bkd->bqk"}> : () -> ()
    %cst_15 = arith.constant dense<0.000000e+00> : vector<2x8x8xf32>
    %34 = tpu.matmul %29, %31, %cst_15 {dimension_numbers = #tpu.dot_dimension_numbers<[2], [2], [1], [1], [0, 0, 0, 1, 1, 1], [0], [0]>} : vector<2x8x8xbf16>, vector<2x8x8xbf16>, vector<2x8x8xf32> -> vector<2x8x8xf32>
    "tpu.trace_stop"() : () -> ()
    %35 = vector.broadcast %27 : vector<2x1x8xf32> to vector<2x8x8xf32>
    %36 = arith.addf %34, %35 : vector<2x8x8xf32>
    %cst_16 = arith.constant dense<0xFF800000> : vector<2x8xf32>
    %37 = vector.multi_reduction <maximumf>, %36, %cst_16 [2] : vector<2x8x8xf32> to vector<2x8xf32>
    %38 = vector.shape_cast %37 : vector<2x8xf32> to vector<2x8x1xf32>
    %39 = vector.broadcast %38 : vector<2x8x1xf32> to vector<2x8x8xf32>
    %40 = arith.subf %36, %39 : vector<2x8x8xf32>
    %41 = math.exp %40 : vector<2x8x8xf32>
    %cst_17 = arith.constant dense<0.000000e+00> : vector<2x8xf32>
    %42 = vector.multi_reduction <add>, %41, %cst_17 [2] : vector<2x8x8xf32> to vector<2x8xf32>
    %43 = vector.shape_cast %42 : vector<2x8xf32> to vector<2x8x1xf32>
    %44 = tpu.reciprocal %43 : vector<2x8x1xf32> -> vector<2x8x1xf32>
    %45 = vector.broadcast %44 : vector<2x8x1xf32> to vector<2x8x8xf32>
    %46 = arith.mulf %41, %45 : vector<2x8x8xf32>
    %47 = arith.truncf %46 : vector<2x8x8xf32> to vector<2x8x8xbf16>
    "tpu.trace_start"() <{level = 10 : i32, message = "bqk,bkd->bqd"}> : () -> ()
    %cst_18 = arith.constant dense<0.000000e+00> : vector<2x8x8xf32>
    %48 = tpu.matmul %47, %33, %cst_18 {dimension_numbers = #tpu.dot_dimension_numbers<[2], [1], [1], [2], [0, 0, 0, 1, 1, 2], [0], [0]>} : vector<2x8x8xbf16>, vector<2x8x8xbf16>, vector<2x8x8xf32> -> vector<2x8x8xf32>
    "tpu.trace_stop"() : () -> ()
    %49 = vector.shape_cast %48 : vector<2x8x8xf32> to vector<16x8xf32>
    %50 = arith.truncf %49 : vector<16x8xf32> to vector<16x8xbf16>
    %c0_19 = arith.constant 0 : index
    %c0_20 = arith.constant 0 : index
    %51 = vector.load %arg18[%c0_19, %c0_20] : memref<16x32xbf16, #tpu.memory_space<vmem>>, vector<16x8xbf16>
    tpu.vector_store %arg18[%c0_19, %c0_20], %50 {strides = array<i32>} : memref<16x32xbf16, #tpu.memory_space<vmem>>, vector<16x8xbf16>,
    %52 = vector.extract_strided_slice %22 {offsets = [0, 8], sizes = [16, 8], strides = [1, 1]} : vector<16x32xbf16> to vector<16x8xbf16>
    %53 = vector.shape_cast %52 : vector<16x8xbf16> to vector<2x8x8xbf16>
    %54 = vector.extract_strided_slice %24 {offsets = [0, 8], sizes = [16, 8], strides = [1, 1]} : vector<16x32xbf16> to vector<16x8xbf16>
    %55 = vector.shape_cast %54 : vector<16x8xbf16> to vector<2x8x8xbf16>
    %56 = vector.extract_strided_slice %26 {offsets = [0, 8], sizes = [16, 8], strides = [1, 1]} : vector<16x32xbf16> to vector<16x8xbf16>
    %57 = vector.shape_cast %56 : vector<16x8xbf16> to vector<2x8x8xbf16>
    "tpu.trace_start"() <{level = 10 : i32, message = "bqd,bkd->bqk"}> : () -> ()
    %cst_21 = arith.constant dense<0.000000e+00> : vector<2x8x8xf32>
    %58 = tpu.matmul %53, %55, %cst_21 {dimension_numbers = #tpu.dot_dimension_numbers<[2], [2], [1], [1], [0, 0, 0, 1, 1, 1], [0], [0]>} : vector<2x8x8xbf16>, vector<2x8x8xbf16>, vector<2x8x8xf32> -> vector<2x8x8xf32>
    "tpu.trace_stop"() : () -> ()
    %59 = vector.broadcast %27 : vector<2x1x8xf32> to vector<2x8x8xf32>
    %60 = arith.addf %58, %59 : vector<2x8x8xf32>
    %cst_22 = arith.constant dense<0xFF800000> : vector<2x8xf32>
    %61 = vector.multi_reduction <maximumf>, %60, %cst_22 [2] : vector<2x8x8xf32> to vector<2x8xf32>
    %62 = vector.shape_cast %61 : vector<2x8xf32> to vector<2x8x1xf32>
    %63 = vector.broadcast %62 : vector<2x8x1xf32> to vector<2x8x8xf32>
    %64 = arith.subf %60, %63 : vector<2x8x8xf32>
    %65 = math.exp %64 : vector<2x8x8xf32>
    %cst_23 = arith.constant dense<0.000000e+00> : vector<2x8xf32>
    %66 = vector.multi_reduction <add>, %65, %cst_23 [2] : vector<2x8x8xf32> to vector<2x8xf32>
    %67 = vector.shape_cast %66 : vector<2x8xf32> to vector<2x8x1xf32>
    %68 = tpu.reciprocal %67 : vector<2x8x1xf32> -> vector<2x8x1xf32>
    %69 = vector.broadcast %68 : vector<2x8x1xf32> to vector<2x8x8xf32>
    %70 = arith.mulf %65, %69 : vector<2x8x8xf32>
    %71 = arith.truncf %70 : vector<2x8x8xf32> to vector<2x8x8xbf16>
    "tpu.trace_start"() <{level = 10 : i32, message = "bqk,bkd->bqd"}> : () -> ()
    %cst_24 = arith.constant dense<0.000000e+00> : vector<2x8x8xf32>
    %72 = tpu.matmul %71, %57, %cst_24 {dimension_numbers = #tpu.dot_dimension_numbers<[2], [1], [1], [2], [0, 0, 0, 1, 1, 2], [0], [0]>} : vector<2x8x8xbf16>, vector<2x8x8xbf16>, vector<2x8x8xf32> -> vector<2x8x8xf32>
    "tpu.trace_stop"() : () -> ()
    %73 = vector.shape_cast %72 : vector<2x8x8xf32> to vector<16x8xf32>
    %74 = arith.truncf %73 : vector<16x8xf32> to vector<16x8xbf16>
    %c0_25 = arith.constant 0 : index
    %c8 = arith.constant 8 : index
    %75 = vector.load %arg18[%c0_25, %c8] : memref<16x32xbf16, #tpu.memory_space<vmem>>, vector<16x8xbf16>
    tpu.vector_store %arg18[%c0_25, %c8], %74 {strides = array<i32>} : memref<16x32xbf16, #tpu.memory_space<vmem>>, vector<16x8xbf16>,
    %76 = vector.extract_strided_slice %22 {offsets = [0, 16], sizes = [16, 8], strides = [1, 1]} : vector<16x32xbf16> to vector<16x8xbf16>
    %77 = vector.shape_cast %76 : vector<16x8xbf16> to vector<2x8x8xbf16>
    %78 = vector.extract_strided_slice %24 {offsets = [0, 16], sizes = [16, 8], strides = [1, 1]} : vector<16x32xbf16> to vector<16x8xbf16>
    %79 = vector.shape_cast %78 : vector<16x8xbf16> to vector<2x8x8xbf16>
    %80 = vector.extract_strided_slice %26 {offsets = [0, 16], sizes = [16, 8], strides = [1, 1]} : vector<16x32xbf16> to vector<16x8xbf16>
    %81 = vector.shape_cast %80 : vector<16x8xbf16> to vector<2x8x8xbf16>
    "tpu.trace_start"() <{level = 10 : i32, message = "bqd,bkd->bqk"}> : () -> ()
    %cst_26 = arith.constant dense<0.000000e+00> : vector<2x8x8xf32>
    %82 = tpu.matmul %77, %79, %cst_26 {dimension_numbers = #tpu.dot_dimension_numbers<[2], [2], [1], [1], [0, 0, 0, 1, 1, 1], [0], [0]>} : vector<2x8x8xbf16>, vector<2x8x8xbf16>, vector<2x8x8xf32> -> vector<2x8x8xf32>
    "tpu.trace_stop"() : () -> ()
    %83 = vector.broadcast %27 : vector<2x1x8xf32> to vector<2x8x8xf32>
    %84 = arith.addf %82, %83 : vector<2x8x8xf32>
    %cst_27 = arith.constant dense<0xFF800000> : vector<2x8xf32>
    %85 = vector.multi_reduction <maximumf>, %84, %cst_27 [2] : vector<2x8x8xf32> to vector<2x8xf32>
    %86 = vector.shape_cast %85 : vector<2x8xf32> to vector<2x8x1xf32>
    %87 = vector.broadcast %86 : vector<2x8x1xf32> to vector<2x8x8xf32>
    %88 = arith.subf %84, %87 : vector<2x8x8xf32>
    %89 = math.exp %88 : vector<2x8x8xf32>
    %cst_28 = arith.constant dense<0.000000e+00> : vector<2x8xf32>
    %90 = vector.multi_reduction <add>, %89, %cst_28 [2] : vector<2x8x8xf32> to vector<2x8xf32>
    %91 = vector.shape_cast %90 : vector<2x8xf32> to vector<2x8x1xf32>
    %92 = tpu.reciprocal %91 : vector<2x8x1xf32> -> vector<2x8x1xf32>
    %93 = vector.broadcast %92 : vector<2x8x1xf32> to vector<2x8x8xf32>
    %94 = arith.mulf %89, %93 : vector<2x8x8xf32>
    %95 = arith.truncf %94 : vector<2x8x8xf32> to vector<2x8x8xbf16>
    "tpu.trace_start"() <{level = 10 : i32, message = "bqk,bkd->bqd"}> : () -> ()
    %cst_29 = arith.constant dense<0.000000e+00> : vector<2x8x8xf32>
    %96 = tpu.matmul %95, %81, %cst_29 {dimension_numbers = #tpu.dot_dimension_numbers<[2], [1], [1], [2], [0, 0, 0, 1, 1, 2], [0], [0]>} : vector<2x8x8xbf16>, vector<2x8x8xbf16>, vector<2x8x8xf32> -> vector<2x8x8xf32>
    "tpu.trace_stop"() : () -> ()
    %97 = vector.shape_cast %96 : vector<2x8x8xf32> to vector<16x8xf32>
    %98 = arith.truncf %97 : vector<16x8xf32> to vector<16x8xbf16>
    %c0_30 = arith.constant 0 : index
    %c16 = arith.constant 16 : index
    %99 = vector.load %arg18[%c0_30, %c16] : memref<16x32xbf16, #tpu.memory_space<vmem>>, vector<16x8xbf16>
    tpu.vector_store %arg18[%c0_30, %c16], %98 {strides = array<i32>} : memref<16x32xbf16, #tpu.memory_space<vmem>>, vector<16x8xbf16>,
    %100 = vector.extract_strided_slice %22 {offsets = [0, 24], sizes = [16, 8], strides = [1, 1]} : vector<16x32xbf16> to vector<16x8xbf16>
    %101 = vector.shape_cast %100 : vector<16x8xbf16> to vector<2x8x8xbf16>
    %102 = vector.extract_strided_slice %24 {offsets = [0, 24], sizes = [16, 8], strides = [1, 1]} : vector<16x32xbf16> to vector<16x8xbf16>
    %103 = vector.shape_cast %102 : vector<16x8xbf16> to vector<2x8x8xbf16>
    %104 = vector.extract_strided_slice %26 {offsets = [0, 24], sizes = [16, 8], strides = [1, 1]} : vector<16x32xbf16> to vector<16x8xbf16>
    %105 = vector.shape_cast %104 : vector<16x8xbf16> to vector<2x8x8xbf16>
    "tpu.trace_start"() <{level = 10 : i32, message = "bqd,bkd->bqk"}> : () -> ()
    %cst_31 = arith.constant dense<0.000000e+00> : vector<2x8x8xf32>
    %106 = tpu.matmul %101, %103, %cst_31 {dimension_numbers = #tpu.dot_dimension_numbers<[2], [2], [1], [1], [0, 0, 0, 1, 1, 1], [0], [0]>} : vector<2x8x8xbf16>, vector<2x8x8xbf16>, vector<2x8x8xf32> -> vector<2x8x8xf32>
    "tpu.trace_stop"() : () -> ()
    %107 = vector.broadcast %27 : vector<2x1x8xf32> to vector<2x8x8xf32>
    %108 = arith.addf %106, %107 : vector<2x8x8xf32>
    %cst_32 = arith.constant dense<0xFF800000> : vector<2x8xf32>
    %109 = vector.multi_reduction <maximumf>, %108, %cst_32 [2] : vector<2x8x8xf32> to vector<2x8xf32>
    %110 = vector.shape_cast %109 : vector<2x8xf32> to vector<2x8x1xf32>
    %111 = vector.broadcast %110 : vector<2x8x1xf32> to vector<2x8x8xf32>
    %112 = arith.subf %108, %111 : vector<2x8x8xf32>
    %113 = math.exp %112 : vector<2x8x8xf32>
    %cst_33 = arith.constant dense<0.000000e+00> : vector<2x8xf32>
    %114 = vector.multi_reduction <add>, %113, %cst_33 [2] : vector<2x8x8xf32> to vector<2x8xf32>
    %115 = vector.shape_cast %114 : vector<2x8xf32> to vector<2x8x1xf32>
    %116 = tpu.reciprocal %115 : vector<2x8x1xf32> -> vector<2x8x1xf32>
    %117 = vector.broadcast %116 : vector<2x8x1xf32> to vector<2x8x8xf32>
    %118 = arith.mulf %113, %117 : vector<2x8x8xf32>
    %119 = arith.truncf %118 : vector<2x8x8xf32> to vector<2x8x8xbf16>
    "tpu.trace_start"() <{level = 10 : i32, message = "bqk,bkd->bqd"}> : () -> ()
    %cst_34 = arith.constant dense<0.000000e+00> : vector<2x8x8xf32>
    %120 = tpu.matmul %119, %105, %cst_34 {dimension_numbers = #tpu.dot_dimension_numbers<[2], [1], [1], [2], [0, 0, 0, 1, 1, 2], [0], [0]>} : vector<2x8x8xbf16>, vector<2x8x8xbf16>, vector<2x8x8xf32> -> vector<2x8x8xf32>
    "tpu.trace_stop"() : () -> ()
    %121 = vector.shape_cast %120 : vector<2x8x8xf32> to vector<16x8xf32>
    %122 = arith.truncf %121 : vector<16x8xf32> to vector<16x8xbf16>
    %c0_35 = arith.constant 0 : index
    %c24 = arith.constant 24 : index
    %123 = vector.load %arg18[%c0_35, %c24] : memref<16x32xbf16, #tpu.memory_space<vmem>>, vector<16x8xbf16>
    tpu.vector_store %arg18[%c0_35, %c24], %122 {strides = array<i32>} : memref<16x32xbf16, #tpu.memory_space<vmem>>, vector<16x8xbf16>,
    %c0_36 = arith.constant 0 : index
    %c0_37 = arith.constant 0 : index
    %124 = vector.load %arg18[%c0_36, %c0_37] : memref<16x32xbf16, #tpu.memory_space<vmem>>, vector<16x32xbf16>
    %c0_38 = arith.constant 0 : index
    %c0_39 = arith.constant 0 : index
    %c0_40 = arith.constant 0 : index
    %125 = vector.load %arg7[%c0_38, %c0_39, %c0_40] : memref<1x32x32xbf16, #tpu.memory_space<vmem>>, vector<1x32x32xbf16>
    %126 = vector.shape_cast %125 : vector<1x32x32xbf16> to vector<32x32xbf16>
    %cst_41 = arith.constant dense<0.000000e+00> : vector<16x32xf32>
    %127 = tpu.matmul %124, %126, %cst_41 {dimension_numbers = #tpu.dot_dimension_numbers<[1], [0], [0], [1], [0, 0, 1, 1], [], []>} : vector<16x32xbf16>, vector<32x32xbf16>, vector<16x32xf32> -> vector<16x32xf32>
    %128 = vector.broadcast %8 : vector<1x32xf32> to vector<16x32xf32>
    %129 = arith.addf %127, %128 : vector<16x32xf32>
    %130 = arith.addf %129, %4 : vector<16x32xf32>
    %cst_42 = arith.constant dense<0.000000e+00> : vector<16xf32>
    %131 = vector.multi_reduction <add>, %130, %cst_42 [1] : vector<16x32xf32> to vector<16xf32>
    %132 = vector.shape_cast %131 : vector<16xf32> to vector<16x1xf32>
    %cst_43 = arith.constant 3.200000e+01 : f32
    %133 = vector.broadcast %cst_43 : f32 to vector<16x1xf32>
    %134 = arith.divf %132, %133 : vector<16x1xf32>
    %135 = vector.broadcast %134 : vector<16x1xf32> to vector<16x32xf32>
    %136 = arith.subf %130, %135 : vector<16x32xf32>
    %137 = arith.mulf %136, %136 : vector<16x32xf32>
    %cst_44 = arith.constant dense<0.000000e+00> : vector<16xf32>
    %138 = vector.multi_reduction <add>, %137, %cst_44 [1] : vector<16x32xf32> to vector<16xf32>
    %139 = vector.shape_cast %138 : vector<16xf32> to vector<16x1xf32>
    %cst_45 = arith.constant 3.200000e+01 : f32
    %140 = vector.broadcast %cst_45 : f32 to vector<16x1xf32>
    %141 = arith.divf %139, %140 : vector<16x1xf32>
    %142 = vector.broadcast %134 : vector<16x1xf32> to vector<16x32xf32>
    %143 = arith.subf %130, %142 : vector<16x32xf32>
    %cst_46 = arith.constant 9.99999996E-13 : f32
    %144 = vector.broadcast %cst_46 : f32 to vector<16x1xf32>
    %145 = arith.addf %141, %144 : vector<16x1xf32>
    %146 = math.rsqrt %145 : vector<16x1xf32>
    %147 = vector.broadcast %146 : vector<16x1xf32> to vector<16x32xf32>
    %148 = arith.mulf %143, %147 : vector<16x32xf32>
    %149 = vector.broadcast %9 : vector<1x32xf32> to vector<16x32xf32>
    %150 = arith.mulf %148, %149 : vector<16x32xf32>
    %151 = vector.broadcast %10 : vector<1x32xf32> to vector<16x32xf32>
    %152 = arith.addf %150, %151 : vector<16x32xf32>
    %153 = arith.truncf %152 : vector<16x32xf32> to vector<16x32xbf16>
    %c0_47 = arith.constant 0 : index
    %c0_48 = arith.constant 0 : index
    %c0_49 = arith.constant 0 : index
    %154 = vector.load %arg8[%c0_47, %c0_48, %c0_49] : memref<1x32x64xbf16, #tpu.memory_space<vmem>>, vector<1x32x64xbf16>
    %155 = vector.shape_cast %154 : vector<1x32x64xbf16> to vector<32x64xbf16>
    %cst_50 = arith.constant dense<0.000000e+00> : vector<16x64xf32>
    %156 = tpu.matmul %153, %155, %cst_50 {dimension_numbers = #tpu.dot_dimension_numbers<[1], [0], [0], [1], [0, 0, 1, 1], [], []>} : vector<16x32xbf16>, vector<32x64xbf16>, vector<16x64xf32> -> vector<16x64xf32>
    %c0_51 = arith.constant 0 : index
    %c0_52 = arith.constant 0 : index
    %c0_53 = arith.constant 0 : index
    %157 = vector.load %arg10[%c0_51, %c0_52, %c0_53] : memref<1x1x64xf32, #tpu.memory_space<vmem>>, vector<1x1x64xf32>
    %158 = vector.shape_cast %157 : vector<1x1x64xf32> to vector<1x64xf32>
    %159 = vector.broadcast %158 : vector<1x64xf32> to vector<16x64xf32>
    %160 = arith.addf %156, %159 : vector<16x64xf32>
    %cst_54 = arith.constant 5.000000e-01 : f32
    %161 = vector.broadcast %cst_54 : f32 to vector<16x64xf32>
    %162 = arith.mulf %161, %160 : vector<16x64xf32>
    %cst_55 = arith.constant 2.000000e+00 : f32
    %163 = math.sqrt %cst_55 : f32
    %cst_56 = arith.constant 1.000000e+00 : f32
    %164 = arith.divf %cst_56, %163 : f32
    %165 = vector.broadcast %164 : f32 to vector<16x64xf32>
    %166 = arith.mulf %160, %165 : vector<16x64xf32>
    %167 = math.erf %166 : vector<16x64xf32>
    %cst_57 = arith.constant 1.000000e+00 : f32
    %168 = vector.broadcast %cst_57 : f32 to vector<16x64xf32>
    %169 = arith.addf %168, %167 : vector<16x64xf32>
    %170 = arith.mulf %162, %169 : vector<16x64xf32>
    %171 = arith.truncf %170 : vector<16x64xf32> to vector<16x64xbf16>
    %c0_58 = arith.constant 0 : index
    %c0_59 = arith.constant 0 : index
    %c0_60 = arith.constant 0 : index
    %172 = vector.load %arg9[%c0_58, %c0_59, %c0_60] : memref<1x64x32xbf16, #tpu.memory_space<vmem>>, vector<1x64x32xbf16>
    %173 = vector.shape_cast %172 : vector<1x64x32xbf16> to vector<64x32xbf16>
    %cst_61 = arith.constant dense<0.000000e+00> : vector<16x32xf32>
    %174 = tpu.matmul %171, %173, %cst_61 {dimension_numbers = #tpu.dot_dimension_numbers<[1], [0], [0], [1], [0, 0, 1, 1], [], []>} : vector<16x64xbf16>, vector<64x32xbf16>, vector<16x32xf32> -> vector<16x32xf32>
    %175 = vector.broadcast %11 : vector<1x32xf32> to vector<16x32xf32>
    %176 = arith.addf %174, %175 : vector<16x32xf32>
    %177 = arith.addf %176, %152 : vector<16x32xf32>
    %cst_62 = arith.constant dense<0.000000e+00> : vector<16xf32>
    %178 = vector.multi_reduction <add>, %177, %cst_62 [1] : vector<16x32xf32> to vector<16xf32>
    %179 = vector.shape_cast %178 : vector<16xf32> to vector<16x1xf32>
    %cst_63 = arith.constant 3.200000e+01 : f32
    %180 = vector.broadcast %cst_63 : f32 to vector<16x1xf32>
    %181 = arith.divf %179, %180 : vector<16x1xf32>
    %182 = vector.broadcast %181 : vector<16x1xf32> to vector<16x32xf32>
    %183 = arith.subf %177, %182 : vector<16x32xf32>
    %184 = arith.mulf %183, %183 : vector<16x32xf32>
    %cst_64 = arith.constant dense<0.000000e+00> : vector<16xf32>
    %185 = vector.multi_reduction <add>, %184, %cst_64 [1] : vector<16x32xf32> to vector<16xf32>
    %186 = vector.shape_cast %185 : vector<16xf32> to vector<16x1xf32>
    %cst_65 = arith.constant 3.200000e+01 : f32
    %187 = vector.broadcast %cst_65 : f32 to vector<16x1xf32>
    %188 = arith.divf %186, %187 : vector<16x1xf32>
    %189 = vector.broadcast %181 : vector<16x1xf32> to vector<16x32xf32>
    %190 = arith.subf %177, %189 : vector<16x32xf32>
    %cst_66 = arith.constant 9.99999996E-13 : f32
    %191 = vector.broadcast %cst_66 : f32 to vector<16x1xf32>
    %192 = arith.addf %188, %191 : vector<16x1xf32>
    %193 = math.rsqrt %192 : vector<16x1xf32>
    %194 = vector.broadcast %193 : vector<16x1xf32> to vector<16x32xf32>
    %195 = arith.mulf %190, %194 : vector<16x32xf32>
    %196 = vector.broadcast %12 : vector<1x32xf32> to vector<16x32xf32>
    %197 = arith.mulf %195, %196 : vector<16x32xf32>
    %198 = vector.broadcast %13 : vector<1x32xf32> to vector<16x32xf32>
    %199 = arith.addf %197, %198 : vector<16x32xf32>
    %200 = vector.shape_cast %199 : vector<16x32xf32> to vector<2x8x32xf32>
    %c0_67 = arith.constant 0 : index
    %c0_68 = arith.constant 0 : index
    %c0_69 = arith.constant 0 : index
    %201 = vector.load %arg17[%c0_67, %c0_68, %c0_69] : memref<2x8x32xf32, #tpu.memory_space<vmem>>, vector<2x8x32xf32>
    tpu.vector_store %arg17[%c0_67, %c0_68, %c0_69], %200 {strides = array<i32>} : memref<2x8x32xf32, #tpu.memory_space<vmem>>, vector<2x8x32xf32>,
    %c1_i32 = arith.constant 1 : i32
    %202 = arith.cmpi eq, %arg0, %c1_i32 : i32
    %203 = arith.extui %202 : i1 to i32
    %c0_i32_70 = arith.constant 0 : i32
    %204 = arith.cmpi ne, %203, %c0_i32_70 : i32
    scf.if %204 {
      %205 = vector.extract_strided_slice %200 {offsets = [0, 0, 0], sizes = [2, 1, 32], strides = [1, 1, 1]} : vector<2x8x32xf32> to vector<2x1x32xf32>
      %206 = vector.shape_cast %205 : vector<2x1x32xf32> to vector<2x32xf32>
      %207 = arith.truncf %206 : vector<2x32xf32> to vector<2x32xbf16>
      %c0_71 = arith.constant 0 : index
      %c0_72 = arith.constant 0 : index
      %208 = vector.load %arg12[%c0_71, %c0_72] : memref<32x32xbf16, #tpu.memory_space<vmem>>, vector<32x32xbf16>
      %cst_73 = arith.constant dense<0.000000e+00> : vector<2x32xf32>
      %209 = tpu.matmul %207, %208, %cst_73 {dimension_numbers = #tpu.dot_dimension_numbers<[1], [0], [0], [1], [0, 0, 1, 1], [], []>} : vector<2x32xbf16>, vector<32x32xbf16>, vector<2x32xf32> -> vector<2x32xf32>
      %c0_74 = arith.constant 0 : index
      %c0_75 = arith.constant 0 : index
      %210 = vector.load %arg13[%c0_74, %c0_75] : memref<1x32xf32, #tpu.memory_space<vmem>>, vector<1x32xf32>
      %211 = vector.broadcast %210 : vector<1x32xf32> to vector<2x32xf32>
      %212 = arith.addf %209, %211 : vector<2x32xf32>
      %213 = math.tanh %212 : vector<2x32xf32>
      %214 = arith.truncf %213 : vector<2x32xf32> to vector<2x32xbf16>
      %c0_76 = arith.constant 0 : index
      %c0_77 = arith.constant 0 : index
      %215 = vector.load %arg14[%c0_76, %c0_77] : memref<32x128xbf16, #tpu.memory_space<vmem>>, vector<32x128xbf16>
      %cst_78 = arith.constant dense<0.000000e+00> : vector<2x128xf32>
      %216 = tpu.matmul %214, %215, %cst_78 {dimension_numbers = #tpu.dot_dimension_numbers<[1], [0], [0], [1], [0, 0, 1, 1], [], []>} : vector<2x32xbf16>, vector<32x128xbf16>, vector<2x128xf32> -> vector<2x128xf32>
      %c0_79 = arith.constant 0 : index
      %c0_80 = arith.constant 0 : index
      %217 = vector.load %arg15[%c0_79, %c0_80] : memref<1x128xf32, #tpu.memory_space<vmem>>, vector<1x128xf32>
      %218 = vector.broadcast %217 : vector<1x128xf32> to vector<2x128xf32>
      %219 = arith.addf %216, %218 : vector<2x128xf32>
      %c0_81 = arith.constant 0 : index
      %c0_82 = arith.constant 0 : index
      %220 = vector.load %arg16[%c0_81, %c0_82] : memref<2x128xf32, #tpu.memory_space<vmem>>, vector<2x128xf32>
      tpu.vector_store %arg16[%c0_81, %c0_82], %219 {strides = array<i32>} : memref<2x128xf32, #tpu.memory_space<vmem>>, vector<2x128xf32>,
    } else {
    }
    return
  }
  func.func @transform_0(%arg0: i32) -> (i32, i32, i32) {
    %c0_i32 = arith.constant 0 : i32
    %c0_i32_0 = arith.constant 0 : i32
    %c0_i32_1 = arith.constant 0 : i32
    %c0_i32_2 = arith.constant 0 : i32
    return %c0_i32, %c0_i32_0, %c0_i32_1 : i32, i32, i32
  }
  func.func @transform_1(%arg0: i32) -> (i32, i32, i32) {
    %c0_i32 = arith.constant 0 : i32
    %c0_i32_0 = arith.constant 0 : i32
    %c0_i32_1 = arith.constant 0 : i32
    %c0_i32_2 = arith.constant 0 : i32
    return %c0_i32, %c0_i32_0, %c0_i32_1 : i32, i32, i32
  }
  func.func @transform_2(%arg0: i32) -> (i32, i32) {
    %c0_i32 = arith.constant 0 : i32
    %c0_i32_0 = arith.constant 0 : i32
    %c0_i32_1 = arith.constant 0 : i32
    return %c0_i32, %c0_i32_0 : i32, i32
  }
  func.func @transform_3(%arg0: i32) -> (i32, i32) {
    %c0_i32 = arith.constant 0 : i32
    %c0_i32_0 = arith.constant 0 : i32
    %c0_i32_1 = arith.constant 0 : i32
    return %c0_i32, %c0_i32_0 : i32, i32
  }
  func.func @transform_4(%arg0: i32) -> (i32, i32, i32) {
    %c0_i32 = arith.constant 0 : i32
    %c0_i32_0 = arith.constant 0 : i32
    %c0_i32_1 = arith.constant 0 : i32
    return %arg0, %c0_i32, %c0_i32_0 : i32, i32, i32
  }
  func.func @transform_5(%arg0: i32) -> (i32, i32, i32) {
    %c0_i32 = arith.constant 0 : i32
    %c0_i32_0 = arith.constant 0 : i32
    %c0_i32_1 = arith.constant 0 : i32
    return %arg0, %c0_i32, %c0_i32_0 : i32, i32, i32
  }
  func.func @transform_6(%arg0: i32) -> (i32, i32, i32) {
    %c0_i32 = arith.constant 0 : i32
    %c0_i32_0 = arith.constant 0 : i32
    %c0_i32_1 = arith.constant 0 : i32
    return %arg0, %c0_i32, %c0_i32_0 : i32, i32, i32
  }
  func.func @transform_7(%arg0: i32) -> (i32, i32, i32) {
    %c0_i32 = arith.constant 0 : i32
    %c0_i32_0 = arith.constant 0 : i32
    %c0_i32_1 = arith.constant 0 : i32
    return %arg0, %c0_i32, %c0_i32_0 : i32, i32, i32
  }
  func.func @transform_8(%arg0: i32) -> (i32, i32, i32) {
    %c0_i32 = arith.constant 0 : i32
    %c0_i32_0 = arith.constant 0 : i32
    %c0_i32_1 = arith.constant 0 : i32
    return %arg0, %c0_i32, %c0_i32_0 : i32, i32, i32
  }
  func.func @transform_9(%arg0: i32) -> (i32, i32, i32) {
    %c0_i32 = arith.constant 0 : i32
    %c0_i32_0 = arith.constant 0 : i32
    %c0_i32_1 = arith.constant 0 : i32
    return %arg0, %c0_i32, %c0_i32_0 : i32, i32, i32
  }
  func.func @transform_10(%arg0: i32) -> (i32, i32, i32) {
    %c0_i32 = arith.constant 0 : i32
    %c0_i32_0 = arith.constant 0 : i32
    %c0_i32_1 = arith.constant 0 : i32
    return %arg0, %c0_i32, %c0_i32_0 : i32, i32, i32
  }
  func.func @transform_11(%arg0: i32) -> (i32, i32) {
    %c0_i32 = arith.constant 0 : i32
    %c0_i32_0 = arith.constant 0 : i32
    %c0_i32_1 = arith.constant 0 : i32
    return %c0_i32, %c0_i32_0 : i32, i32
  }
  func.func @transform_12(%arg0: i32) -> (i32, i32) {
    %c0_i32 = arith.constant 0 : i32
    %c0_i32_0 = arith.constant 0 : i32
    %c0_i32_1 = arith.constant 0 : i32
    return %c0_i32, %c0_i32_0 : i32, i32
  }
  func.func @transform_13(%arg0: i32) -> (i32, i32) {
    %c0_i32 = arith.constant 0 : i32
    %c0_i32_0 = arith.constant 0 : i32
    %c0_i32_1 = arith.constant 0 : i32
    return %c0_i32, %c0_i32_0 : i32, i32
  }
  func.func @transform_14(%arg0: i32) -> (i32, i32) {
    %c0_i32 = arith.constant 0 : i32
    %c0_i32_0 = arith.constant 0 : i32
    %c0_i32_1 = arith.constant 0 : i32
    return %c0_i32, %c0_i32_0 : i32, i32
  }
  func.func @transform_15(%arg0: i32) -> (i32, i32) {
    %c0_i32 = arith.constant 0 : i32
    %c0_i32_0 = arith.constant 0 : i32
    %c0_i32_1 = arith.constant 0 : i32
    return %c0_i32, %c0_i32_0 : i32, i32
  }
}

</mosaic_0001>

<llo_original>
// kernel: tpu_custom_call.1
$region0: #{tpu_custom_call.1}
  #allocation0 [shape = 'u32[]', space=smem, size = 0x4, offset = 0x4, fixed_abs, tag = 'smem constant byte address 0x4 - core index']
  #allocation1 [shape = 'u32[144,128]{1,0:T(1,128)}', space=vmem, size = 0x12000, scoped, tag = 'internal scratch']
  #allocation2 [shape = 'f32[2,8,32]{2,1,0:T(8,128)}', space=vmem, size = 0x2000, scoped, tag = 'scratch operand']
  #allocation3 [shape = 'bf16[16,32]{1,0:T(8,128)(2,1)}', space=vmem, size = 0x1000, scoped, tag = 'scratch operand']
  %s0 = inlined_call_operand.hbm [shape: bf16[2,8,32], index: 0, kind: input, shape index: {}]
  %s1 = inlined_call_operand.hbm [shape: f32[2,1,8], index: 1, kind: input, shape index: {}]
  %s2 = inlined_call_operand.hbm [shape: f32[1,32], index: 2, kind: input, shape index: {}]
  %s3 = inlined_call_operand.hbm [shape: f32[1,32], index: 3, kind: input, shape index: {}]
  %s4 = inlined_call_operand.vmem [shape: bf16[2,32,96], index: 4, kind: input, shape index: {}]
  %s5 = inlined_call_operand.hbm [shape: f32[2,1,96], index: 5, kind: input, shape index: {}]
  %s6 = inlined_call_operand.vmem [shape: bf16[2,32,32], index: 6, kind: input, shape index: {}]
  %s7 = inlined_call_operand.vmem [shape: bf16[2,32,64], index: 7, kind: input, shape index: {}]
  %s8 = inlined_call_operand.vmem [shape: bf16[2,64,32], index: 8, kind: input, shape index: {}]
  %s9 = inlined_call_operand.hbm [shape: f32[2,1,64], index: 9, kind: input, shape index: {}]
  %s10 = inlined_call_operand.vmem [shape: f32[2,6,32], index: 10, kind: input, shape index: {}]
  %s11 = inlined_call_operand.vmem [shape: bf16[32,32], index: 11, kind: input, shape index: {}]
  %s12 = inlined_call_operand.vmem [shape: f32[1,32], index: 12, kind: input, shape index: {}]
  %s13 = inlined_call_operand.hbm [shape: bf16[32,128], index: 13, kind: input, shape index: {}]
  %s14 = inlined_call_operand.vmem [shape: f32[1,128], index: 14, kind: input, shape index: {}]
  %s15 = inlined_call_operand.hbm [shape: f32[2,128], index: 15, kind: output, shape index: {}]
  %s16 = sld [smem:[#allocation0]]
  $region129: #{tpu_custom_call.1} parent=0
    _
  %s18 = ssub.s32 1, %s16
  %s19 = scalar_select 0, %s18, %s16
  $region1: #{tpu_custom_call.1} parent=0
    #allocation4 [shape = 'u8[4096]{0}', space=vmem, size = 0x1000, scoped, tag = 'input window, operand 0, single buffered']
    #allocation5 [shape = 's32[2]{0}', space=sflag, size = 0x8, scoped, tag = 'scoped memory for tpu_custom_call.1']
    #allocation6 [shape = 's32[2]{0}', space=sflag, size = 0x8, scoped, tag = 'scoped memory for tpu_custom_call.1']
    #allocation7 [shape = 'u8[1024]{0}', space=vmem, size = 0x400, scoped, tag = 'input window, operand 1, single buffered']
    #allocation8 [shape = 's32[1]{0}', space=sflag, size = 0x4, scoped, tag = 'scoped memory for tpu_custom_call.1']
    #allocation9 [shape = 'u8[512]{0}', space=vmem, size = 0x400, scoped, tag = 'input window, operand 2, single buffered']
    #allocation10 [shape = 'u8[512]{0}', space=vmem, size = 0x400, scoped, tag = 'input window, operand 3, single buffered']
    #allocation11 [shape = 's32[1]{0}', space=sflag, size = 0x4, scoped, tag = 'scoped memory for tpu_custom_call.1']
    #allocation12 [shape = 'u8[1024]{0}', space=vmem, size = 0x400, scoped, tag = 'input window, operand 5']
    #allocation13 [shape = 'u8[1024]{0}', space=vmem, size = 0x400, scoped, tag = 'input window, operand 9']
    #allocation14 [shape = 'u8[8192]{0}', space=vmem, size = 0x2000, scoped, tag = 'input window, operand 13, single buffered']
    #allocation15 [shape = 'u8[1024]{0}', space=vmem, size = 0x400, scoped, tag = 'output window, operand 0, single buffered']
    %20 = vsyncpa [#allocation5], 0
    %21 = vsyncpa [#allocation8], 0
    %22 = vsyncpa [#allocation11], 0
    %23 = vsyncpa [#allocation6], 0
    loop: start=0, step=1, limit=4
    $region2: #{tpu_custom_call.1} parent=1 // loop_pre_header
      _
    $region3: #{tpu_custom_call.1} parent=1 // loop_header
      %s25 = sphi 0, %s29
      %p26 = scmp.ge.s32.totalorder %s25, 4
      %s33 = sphi 0, %s33
      %s35 = sphi 0, %s33
      %s36 = sphi 0, %s35
      %s50 = sphi 0, %s36
      %s54 = sphi 0, %s54
      %s56 = sphi 0, %s54
      %s57 = sphi 0, %s56
      %s71 = sphi 0, %s57
      %s75 = sphi 0, %s75
      %s77 = sphi 0, %s75
      %s78 = sphi 0, %s77
      %s92 = sphi 0, %s78
      %s96 = sphi 0, %s96
      %s98 = sphi 0, %s96
      %s99 = sphi 0, %s98
      %s113 = sphi 0, %s99
      %s119 = sphi 0, %s121
      %s122 = sphi 0, %s119
      %s123 = sphi 0, %s122
      %s139 = sphi 0, %s123
      %s145 = sphi 0, %s147
      %s148 = sphi 0, %s145
      %s149 = sphi 0, %s148
      %s165 = sphi 0, %s149
      %s171 = sphi 0, %s173
      %s174 = sphi 0, %s171
      %s175 = sphi 0, %s174
      %s191 = sphi 0, %s175
      %s197 = sphi 0, %s199
      %s200 = sphi 0, %s197
      %s201 = sphi 0, %s200
      %s217 = sphi 0, %s201
      %s223 = sphi 0, %s225
      %s226 = sphi 0, %s223
      %s227 = sphi 0, %s226
      %s243 = sphi 0, %s227
      %s249 = sphi 0, %s251
      %s252 = sphi 0, %s249
      %s253 = sphi 0, %s252
      %s269 = sphi 0, %s253
      %s275 = sphi 0, %s277
      %s278 = sphi 0, %s275
      %s279 = sphi 0, %s278
      %s295 = sphi 0, %s279
      %s299 = sphi 0, %s299
      %s301 = sphi 0, %s299
      %s302 = sphi 0, %s301
      %s316 = sphi 0, %s302
      %s320 = sphi 0, %s320
      %s322 = sphi 0, %s320
      %s323 = sphi 0, %s322
      %s337 = sphi 0, %s323
      %s341 = sphi 0, %s341
      %s343 = sphi 0, %s341
      %s344 = sphi 0, %s343
      %s358 = sphi 0, %s344
      %s362 = sphi 0, %s362
      %s364 = sphi 0, %s362
      %s365 = sphi 0, %s364
      %s379 = sphi 0, %s365
      %s383 = sphi 0, %s383
      %s385 = sphi 0, %s383
      %s386 = sphi 0, %s385
      %s400 = sphi 0, %s386
    $region4: #{tpu_custom_call.1} parent=1 // loop_header_branch
      %28 = sbr.rel (%p26) target = $region8
    $region5: #{tpu_custom_call.1} parent=1 // loop_body
      %s30 = ssub.s32 %s25, 1
      %s31 = ssub.s32 %s25, 2
      %s32 = sadd.s32 %s25, 1
      %s34 = sadd.s32 %s33, 1
      %p37 = scmp.eq.s32.totalorder %s25, 1
      %p38 = scmp.ne.s32.totalorder %s33, %s35
      %p39 = scmp.eq.s32.totalorder %s25, 0
      %p40 = por %p38, %p39
      %p41 = scmp.ne.s32.totalorder %s33, %s35
      %p42 = scmp.eq.s32.totalorder %s30, 1
      %p43 = por %p41, %p42
      %p44 = scmp.ne.s32.totalorder %s35, %s36
      %p45 = scmp.eq.s32.totalorder %s30, 0
      %p46 = por %p44, %p45
      %p47 = scmp.ne.s32.totalorder %s35, %s36
      %p48 = scmp.eq.s32.totalorder %s31, 1
      %p49 = por %p47, %p48
      %p51 = scmp.ne.s32.totalorder %s36, %s50
      %p52 = scmp.eq.s32.totalorder %s31, 0
      %p53 = por %p51, %p52
      %s55 = sadd.s32 %s54, 1
      %p58 = scmp.eq.s32.totalorder %s25, 1
      %p59 = scmp.ne.s32.totalorder %s54, %s56
      %p60 = scmp.eq.s32.totalorder %s25, 0
      %p61 = por %p59, %p60
      %p62 = scmp.ne.s32.totalorder %s54, %s56
      %p63 = scmp.eq.s32.totalorder %s30, 1
      %p64 = por %p62, %p63
      %p65 = scmp.ne.s32.totalorder %s56, %s57
      %p66 = scmp.eq.s32.totalorder %s30, 0
      %p67 = por %p65, %p66
      %p68 = scmp.ne.s32.totalorder %s56, %s57
      %p69 = scmp.eq.s32.totalorder %s31, 1
      %p70 = por %p68, %p69
      %p72 = scmp.ne.s32.totalorder %s57, %s71
      %p73 = scmp.eq.s32.totalorder %s31, 0
      %p74 = por %p72, %p73
      %s76 = sadd.s32 %s75, 1
      %p79 = scmp.eq.s32.totalorder %s25, 1
      %p80 = scmp.ne.s32.totalorder %s75, %s77
      %p81 = scmp.eq.s32.totalorder %s25, 0
      %p82 = por %p80, %p81
      %p83 = scmp.ne.s32.totalorder %s75, %s77
      %p84 = scmp.eq.s32.totalorder %s30, 1
      %p85 = por %p83, %p84
      %p86 = scmp.ne.s32.totalorder %s77, %s78
      %p87 = scmp.eq.s32.totalorder %s30, 0
      %p88 = por %p86, %p87
      %p89 = scmp.ne.s32.totalorder %s77, %s78
      %p90 = scmp.eq.s32.totalorder %s31, 1
      %p91 = por %p89, %p90
      %p93 = scmp.ne.s32.totalorder %s78, %s92
      %p94 = scmp.eq.s32.totalorder %s31, 0
      %p95 = por %p93, %p94
      %s97 = sadd.s32 %s96, 1
      %p100 = scmp.eq.s32.totalorder %s25, 1
      %p101 = scmp.ne.s32.totalorder %s96, %s98
      %p102 = scmp.eq.s32.totalorder %s25, 0
      %p103 = por %p101, %p102
      %p104 = scmp.ne.s32.totalorder %s96, %s98
      %p105 = scmp.eq.s32.totalorder %s30, 1
      %p106 = por %p104, %p105
      %p107 = scmp.ne.s32.totalorder %s98, %s99
      %p108 = scmp.eq.s32.totalorder %s30, 0
      %p109 = por %p107, %p108
      %p110 = scmp.ne.s32.totalorder %s98, %s99
      %p111 = scmp.eq.s32.totalorder %s31, 1
      %p112 = por %p110, %p111
      %p114 = scmp.ne.s32.totalorder %s99, %s113
      %p115 = scmp.eq.s32.totalorder %s31, 0
      %p116 = por %p114, %p115
      %s117 = ssub.s32 %s25, %s32
      %p118 = scmp.eq.s32.totalorder %s117, 0
      %s120 = sadd.s32 %s119, 1
      %s121 = scalar_select %p118, %s119, %s120
      %p124 = pneg %p118
      %p125 = scmp.eq.s32.totalorder %s25, 1
      %p126 = por %p124, %p125
      %p127 = scmp.ne.s32.totalorder %s119, %s122
      %p128 = scmp.eq.s32.totalorder %s25, 0
      %p129 = por %p127, %p128
      %p130 = scmp.ne.s32.totalorder %s119, %s122
      %p131 = scmp.eq.s32.totalorder %s30, 1
      %p132 = por %p130, %p131
      %p133 = scmp.ne.s32.totalorder %s122, %s123
      %p134 = scmp.eq.s32.totalorder %s30, 0
      %p135 = por %p133, %p134
      %p136 = scmp.ne.s32.totalorder %s122, %s123
      %p137 = scmp.eq.s32.totalorder %s31, 1
      %p138 = por %p136, %p137
      %p140 = scmp.ne.s32.totalorder %s123, %s139
      %p141 = scmp.eq.s32.totalorder %s31, 0
      %p142 = por %p140, %p141
      %s143 = ssub.s32 %s25, %s32
      %p144 = scmp.eq.s32.totalorder %s143, 0
      %s146 = sadd.s32 %s145, 1
      %s147 = scalar_select %p144, %s145, %s146
      %p150 = pneg %p144
      %p151 = scmp.eq.s32.totalorder %s25, 1
      %p152 = por %p150, %p151
      %p153 = scmp.ne.s32.totalorder %s145, %s148
      %p154 = scmp.eq.s32.totalorder %s25, 0
      %p155 = por %p153, %p154
      %p156 = scmp.ne.s32.totalorder %s145, %s148
      %p157 = scmp.eq.s32.totalorder %s30, 1
      %p158 = por %p156, %p157
      %p159 = scmp.ne.s32.totalorder %s148, %s149
      %p160 = scmp.eq.s32.totalorder %s30, 0
      %p161 = por %p159, %p160
      %p162 = scmp.ne.s32.totalorder %s148, %s149
      %p163 = scmp.eq.s32.totalorder %s31, 1
      %p164 = por %p162, %p163
      %p166 = scmp.ne.s32.totalorder %s149, %s165
      %p167 = scmp.eq.s32.totalorder %s31, 0
      %p168 = por %p166, %p167
      %s169 = ssub.s32 %s25, %s32
      %p170 = scmp.eq.s32.totalorder %s169, 0
      %s172 = sadd.s32 %s171, 1
      %s173 = scalar_select %p170, %s171, %s172
      %p176 = pneg %p170
      %p177 = scmp.eq.s32.totalorder %s25, 1
      %p178 = por %p176, %p177
      %p179 = scmp.ne.s32.totalorder %s171, %s174
      %p180 = scmp.eq.s32.totalorder %s25, 0
      %p181 = por %p179, %p180
      %p182 = scmp.ne.s32.totalorder %s171, %s174
      %p183 = scmp.eq.s32.totalorder %s30, 1
      %p184 = por %p182, %p183
      %p185 = scmp.ne.s32.totalorder %s174, %s175
      %p186 = scmp.eq.s32.totalorder %s30, 0
      %p187 = por %p185, %p186
      %p188 = scmp.ne.s32.totalorder %s174, %s175
      %p189 = scmp.eq.s32.totalorder %s31, 1
      %p190 = por %p188, %p189
      %p192 = scmp.ne.s32.totalorder %s175, %s191
      %p193 = scmp.eq.s32.totalorder %s31, 0
      %p194 = por %p192, %p193
      %s195 = ssub.s32 %s25, %s32
      %p196 = scmp.eq.s32.totalorder %s195, 0
      %s198 = sadd.s32 %s197, 1
      %s199 = scalar_select %p196, %s197, %s198
      %p202 = pneg %p196
      %p203 = scmp.eq.s32.totalorder %s25, 1
      %p204 = por %p202, %p203
      %p205 = scmp.ne.s32.totalorder %s197, %s200
      %p206 = scmp.eq.s32.totalorder %s25, 0
      %p207 = por %p205, %p206
      %p208 = scmp.ne.s32.totalorder %s197, %s200
      %p209 = scmp.eq.s32.totalorder %s30, 1
      %p210 = por %p208, %p209
      %p211 = scmp.ne.s32.totalorder %s200, %s201
      %p212 = scmp.eq.s32.totalorder %s30, 0
      %p213 = por %p211, %p212
      %p214 = scmp.ne.s32.totalorder %s200, %s201
      %p215 = scmp.eq.s32.totalorder %s31, 1
      %p216 = por %p214, %p215
      %p218 = scmp.ne.s32.totalorder %s201, %s217
      %p219 = scmp.eq.s32.totalorder %s31, 0
      %p220 = por %p218, %p219
      %s221 = ssub.s32 %s25, %s32
      %p222 = scmp.eq.s32.totalorder %s221, 0
      %s224 = sadd.s32 %s223, 1
      %s225 = scalar_select %p222, %s223, %s224
      %p228 = pneg %p222
      %p229 = scmp.eq.s32.totalorder %s25, 1
      %p230 = por %p228, %p229
      %p231 = scmp.ne.s32.totalorder %s223, %s226
      %p232 = scmp.eq.s32.totalorder %s25, 0
      %p233 = por %p231, %p232
      %p234 = scmp.ne.s32.totalorder %s223, %s226
      %p235 = scmp.eq.s32.totalorder %s30, 1
      %p236 = por %p234, %p235
      %p237 = scmp.ne.s32.totalorder %s226, %s227
      %p238 = scmp.eq.s32.totalorder %s30, 0
      %p239 = por %p237, %p238
      %p240 = scmp.ne.s32.totalorder %s226, %s227
      %p241 = scmp.eq.s32.totalorder %s31, 1
      %p242 = por %p240, %p241
      %p244 = scmp.ne.s32.totalorder %s227, %s243
      %p245 = scmp.eq.s32.totalorder %s31, 0
      %p246 = por %p244, %p245
      %s247 = ssub.s32 %s25, %s32
      %p248 = scmp.eq.s32.totalorder %s247, 0
      %s250 = sadd.s32 %s249, 1
      %s251 = scalar_select %p248, %s249, %s250
      %p254 = pneg %p248
      %p255 = scmp.eq.s32.totalorder %s25, 1
      %p256 = por %p254, %p255
      %p257 = scmp.ne.s32.totalorder %s249, %s252
      %p258 = scmp.eq.s32.totalorder %s25, 0
      %p259 = por %p257, %p258
      %p260 = scmp.ne.s32.totalorder %s249, %s252
      %p261 = scmp.eq.s32.totalorder %s30, 1
      %p262 = por %p260, %p261
      %p263 = scmp.ne.s32.totalorder %s252, %s253
      %p264 = scmp.eq.s32.totalorder %s30, 0
      %p265 = por %p263, %p264
      %p266 = scmp.ne.s32.totalorder %s252, %s253
      %p267 = scmp.eq.s32.totalorder %s31, 1
      %p268 = por %p266, %p267
      %p270 = scmp.ne.s32.totalorder %s253, %s269
      %p271 = scmp.eq.s32.totalorder %s31, 0
      %p272 = por %p270, %p271
      %s273 = ssub.s32 %s25, %s32
      %p274 = scmp.eq.s32.totalorder %s273, 0
      %s276 = sadd.s32 %s275, 1
      %s277 = scalar_select %p274, %s275, %s276
      %p280 = pneg %p274
      %p281 = scmp.eq.s32.totalorder %s25, 1
      %p282 = por %p280, %p281
      %p283 = scmp.ne.s32.totalorder %s275, %s278
      %p284 = scmp.eq.s32.totalorder %s25, 0
      %p285 = por %p283, %p284
      %p286 = scmp.ne.s32.totalorder %s275, %s278
      %p287 = scmp.eq.s32.totalorder %s30, 1
      %p288 = por %p286, %p287
      %p289 = scmp.ne.s32.totalorder %s278, %s279
      %p290 = scmp.eq.s32.totalorder %s30, 0
      %p291 = por %p289, %p290
      %p292 = scmp.ne.s32.totalorder %s278, %s279
      %p293 = scmp.eq.s32.totalorder %s31, 1
      %p294 = por %p292, %p293
      %p296 = scmp.ne.s32.totalorder %s279, %s295
      %p297 = scmp.eq.s32.totalorder %s31, 0
      %p298 = por %p296, %p297
      %s300 = sadd.s32 %s299, 1
      %p303 = scmp.eq.s32.totalorder %s25, 1
      %p304 = scmp.ne.s32.totalorder %s299, %s301
      %p305 = scmp.eq.s32.totalorder %s25, 0
      %p306 = por %p304, %p305
      %p307 = scmp.ne.s32.totalorder %s299, %s301
      %p308 = scmp.eq.s32.totalorder %s30, 1
      %p309 = por %p307, %p308
      %p310 = scmp.ne.s32.totalorder %s301, %s302
      %p311 = scmp.eq.s32.totalorder %s30, 0
      %p312 = por %p310, %p311
      %p313 = scmp.ne.s32.totalorder %s301, %s302
      %p314 = scmp.eq.s32.totalorder %s31, 1
      %p315 = por %p313, %p314
      %p317 = scmp.ne.s32.totalorder %s302, %s316
      %p318 = scmp.eq.s32.totalorder %s31, 0
      %p319 = por %p317, %p318
      %s321 = sadd.s32 %s320, 1
      %p324 = scmp.eq.s32.totalorder %s25, 1
      %p325 = scmp.ne.s32.totalorder %s320, %s322
      %p326 = scmp.eq.s32.totalorder %s25, 0
      %p327 = por %p325, %p326
      %p328 = scmp.ne.s32.totalorder %s320, %s322
      %p329 = scmp.eq.s32.totalorder %s30, 1
      %p330 = por %p328, %p329
      %p331 = scmp.ne.s32.totalorder %s322, %s323
      %p332 = scmp.eq.s32.totalorder %s30, 0
      %p333 = por %p331, %p332
      %p334 = scmp.ne.s32.totalorder %s322, %s323
      %p335 = scmp.eq.s32.totalorder %s31, 1
      %p336 = por %p334, %p335
      %p338 = scmp.ne.s32.totalorder %s323, %s337
      %p339 = scmp.eq.s32.totalorder %s31, 0
      %p340 = por %p338, %p339
      %s342 = sadd.s32 %s341, 1
      %p345 = scmp.eq.s32.totalorder %s25, 1
      %p346 = scmp.ne.s32.totalorder %s341, %s343
      %p347 = scmp.eq.s32.totalorder %s25, 0
      %p348 = por %p346, %p347
      %p349 = scmp.ne.s32.totalorder %s341, %s343
      %p350 = scmp.eq.s32.totalorder %s30, 1
      %p351 = por %p349, %p350
      %p352 = scmp.ne.s32.totalorder %s343, %s344
      %p353 = scmp.eq.s32.totalorder %s30, 0
      %p354 = por %p352, %p353
      %p355 = scmp.ne.s32.totalorder %s343, %s344
      %p356 = scmp.eq.s32.totalorder %s31, 1
      %p357 = por %p355, %p356
      %p359 = scmp.ne.s32.totalorder %s344, %s358
      %p360 = scmp.eq.s32.totalorder %s31, 0
      %p361 = por %p359, %p360
      %s363 = sadd.s32 %s362, 1
      %p366 = scmp.eq.s32.totalorder %s25, 1
      %p367 = scmp.ne.s32.totalorder %s362, %s364
      %p368 = scmp.eq.s32.totalorder %s25, 0
      %p369 = por %p367, %p368
      %p370 = scmp.ne.s32.totalorder %s362, %s364
      %p371 = scmp.eq.s32.totalorder %s30, 1
      %p372 = por %p370, %p371
      %p373 = scmp.ne.s32.totalorder %s364, %s365
      %p374 = scmp.eq.s32.totalorder %s30, 0
      %p375 = por %p373, %p374
      %p376 = scmp.ne.s32.totalorder %s364, %s365
      %p377 = scmp.eq.s32.totalorder %s31, 1
      %p378 = por %p376, %p377
      %p380 = scmp.ne.s32.totalorder %s365, %s379
      %p381 = scmp.eq.s32.totalorder %s31, 0
      %p382 = por %p380, %p381
      %s384 = sadd.s32 %s383, 1
      %p387 = scmp.eq.s32.totalorder %s25, 1
      %p388 = scmp.ne.s32.totalorder %s383, %s385
      %p389 = scmp.eq.s32.totalorder %s25, 0
      %p390 = por %p388, %p389
      %p391 = scmp.ne.s32.totalorder %s383, %s385
      %p392 = scmp.eq.s32.totalorder %s30, 1
      %p393 = por %p391, %p392
      %p394 = scmp.ne.s32.totalorder %s385, %s386
      %p395 = scmp.eq.s32.totalorder %s30, 0
      %p396 = por %p394, %p395
      %p397 = scmp.ne.s32.totalorder %s385, %s386
      %p398 = scmp.eq.s32.totalorder %s31, 1
      %p399 = por %p397, %p398
      %p401 = scmp.ne.s32.totalorder %s386, %s400
      %p402 = scmp.eq.s32.totalorder %s31, 0
      %p403 = por %p401, %p402
      %p404 = scmp.le.s32.totalorder 1, %s25
      %p405 = scmp.lt.s32.totalorder %s25, 3
      %p406 = pnand %p404, %p405
      %p407 = pneg %p406
      // Predicated region
      $region9: #{tpu_custom_call.1} parent=5 // pred_check
        _
      $region10: #{tpu_custom_call.1} parent=5 // pred_check_branch
        %409 = sbr.rel (%p406) target = $region12
      $region11: #{tpu_custom_call.1} parent=5 // pred_region
        %s410 = ssub.s32 %s25, 1
        // Predicated region
        $region13: #{tpu_custom_call.1} parent=11 // pred_check
          %p411 = pneg %p46
        $region14: #{tpu_custom_call.1} parent=11 // pred_check_branch
          %413 = sbr.rel (%p411) target = $region16
        $region15: #{tpu_custom_call.1} parent=11 // pred_region
          %s415 = ssub.s32 128, 128
          %416 = vsyncadd [#allocation5], %s415
          %s417 = sshll.u32 [#allocation4], 4
          %s418 = int_to_ptr.vmem [resolvable:$true] %s417
          %423 = dma.hbm_to_vmem [thread:$0]  %s0, 128, %s418, [#allocation5], 64, 64, 4
        $region16: #{tpu_custom_call.1} parent=11 // pred_fallthru
          _
        // Predicated region
        $region17: #{tpu_custom_call.1} parent=11 // pred_check
          %p424 = pneg %p67
        $region18: #{tpu_custom_call.1} parent=11 // pred_check_branch
          %426 = sbr.rel (%p424) target = $region20
        $region19: #{tpu_custom_call.1} parent=11 // pred_region
          %s428 = ssub.s32 32, 32
          %429 = vsyncadd [#allocation8], %s428
          %s430 = sshll.u32 [#allocation7], 4
          %s431 = int_to_ptr.vmem [resolvable:$true] %s430
          %436 = dma.hbm_to_vmem [thread:$0]  %s1, 32, %s431, [#allocation8], 16, 16, 1
        $region20: #{tpu_custom_call.1} parent=11 // pred_fallthru
          _
        // Predicated region
        $region21: #{tpu_custom_call.1} parent=11 // pred_check
          %p437 = pneg %p88
        $region22: #{tpu_custom_call.1} parent=11 // pred_check_branch
          %439 = sbr.rel (%p437) target = $region24
        $region23: #{tpu_custom_call.1} parent=11 // pred_region
          %s441 = ssub.s32 16, 16
          %442 = vsyncadd [#allocation8], %s441
          %s444 = sshll.u32 [#allocation9], 4
          %s445 = int_to_ptr.vmem [resolvable:$true] %s444
          %447 = dma.hbm_to_vmem [thread:$0]  %s2, 16, %s445, [#allocation8]
        $region24: #{tpu_custom_call.1} parent=11 // pred_fallthru
          _
        // Predicated region
        $region25: #{tpu_custom_call.1} parent=11 // pred_check
          %p448 = pneg %p109
        $region26: #{tpu_custom_call.1} parent=11 // pred_check_branch
          %450 = sbr.rel (%p448) target = $region28
        $region27: #{tpu_custom_call.1} parent=11 // pred_region
          %s452 = ssub.s32 16, 16
          %453 = vsyncadd [#allocation11], %s452
          %s455 = sshll.u32 [#allocation10], 4
          %s456 = int_to_ptr.vmem [resolvable:$true] %s455
          %458 = dma.hbm_to_vmem [thread:$0]  %s3, 16, %s456, [#allocation11]
        $region28: #{tpu_custom_call.1} parent=11 // pred_fallthru
          _
        // Predicated region
        $region29: #{tpu_custom_call.1} parent=11 // pred_check
          %p459 = pneg %p312
        $region30: #{tpu_custom_call.1} parent=11 // pred_check_branch
          %461 = sbr.rel (%p459) target = $region32
        $region31: #{tpu_custom_call.1} parent=11 // pred_region
          _
        $region32: #{tpu_custom_call.1} parent=11 // pred_fallthru
          _
        // Predicated region
        $region33: #{tpu_custom_call.1} parent=11 // pred_check
          %p462 = pneg %p333
        $region34: #{tpu_custom_call.1} parent=11 // pred_check_branch
          %464 = sbr.rel (%p462) target = $region36
        $region35: #{tpu_custom_call.1} parent=11 // pred_region
          _
        $region36: #{tpu_custom_call.1} parent=11 // pred_fallthru
          _
        // Predicated region
        $region37: #{tpu_custom_call.1} parent=11 // pred_check
          %p465 = pneg %p354
        $region38: #{tpu_custom_call.1} parent=11 // pred_check_branch
          %467 = sbr.rel (%p465) target = $region40
        $region39: #{tpu_custom_call.1} parent=11 // pred_region
          %s469 = ssub.s32 256, 256
          %470 = vsyncadd [#allocation8], %s469
          %s471 = sshll.u32 [#allocation14], 4
          %s472 = int_to_ptr.vmem [resolvable:$true] %s471
          %477 = dma.hbm_to_vmem [thread:$0]  %s13, 256, %s472, [#allocation8], 64, 64, 4
        $region40: #{tpu_custom_call.1} parent=11 // pred_fallthru
          _
        // Predicated region
        $region41: #{tpu_custom_call.1} parent=11 // pred_check
          %p478 = pneg %p375
        $region42: #{tpu_custom_call.1} parent=11 // pred_check_branch
          %480 = sbr.rel (%p478) target = $region44
        $region43: #{tpu_custom_call.1} parent=11 // pred_region
          _
        $region44: #{tpu_custom_call.1} parent=11 // pred_fallthru
          _
      $region12: #{tpu_custom_call.1} parent=5 // pred_fallthru
        _
      %p481 = scmp.lt.s32.totalorder %s25, 2
      // Predicated region
      $region45: #{tpu_custom_call.1} parent=5 // pred_check
        %p482 = pneg %p481
      $region46: #{tpu_custom_call.1} parent=5 // pred_check_branch
        %484 = sbr.rel (%p482) target = $region48
      $region47: #{tpu_custom_call.1} parent=5 // pred_region
        // Predicated region
        $region49: #{tpu_custom_call.1} parent=47 // pred_check
          %p485 = pneg %p129
        $region50: #{tpu_custom_call.1} parent=47 // pred_check_branch
          %487 = sbr.rel (%p485) target = $region52
        $region51: #{tpu_custom_call.1} parent=47 // pred_region
          %p488 = scmp.lt.s32.totalorder %s25, 1
          %s489 = scalar_select %p488, %s25, 1
          %s490 = smul.addr %s489, 4
          %s491 = smul.addr %s490, 4
          %s492 = scalar_lea.vmem %s4, %s491
        $region52: #{tpu_custom_call.1} parent=47 // pred_fallthru
          _
        // Predicated region
        $region53: #{tpu_custom_call.1} parent=47 // pred_check
          %p493 = pneg %p155
        $region54: #{tpu_custom_call.1} parent=47 // pred_check_branch
          %495 = sbr.rel (%p493) target = $region56
        $region55: #{tpu_custom_call.1} parent=47 // pred_region
          %s496 = sand.u32 %s25, 1
          %s497 = scalar_lea.sflag [#allocation5], %s496
          %s498 = sand.u32 %s145, 1
          %s499 = scalar_lea.vmem [#allocation12], %s498
          %s501 = ssub.s32 16, 16
          %502 = vsyncadd %s497, %s501
          %s503 = smul.addr %s25, 16
          %s504 = scalar_lea.hbm %s5, %s503
          %s506 = sshll.u32 %s499, 4
          %s507 = int_to_ptr.vmem [resolvable:$true] %s506
          %509 = dma.hbm_to_vmem [thread:$0]  %s504, 16, %s507, %s497
        $region56: #{tpu_custom_call.1} parent=47 // pred_fallthru
          _
        // Predicated region
        $region57: #{tpu_custom_call.1} parent=47 // pred_check
          %p510 = pneg %p181
        $region58: #{tpu_custom_call.1} parent=47 // pred_check_branch
          %512 = sbr.rel (%p510) target = $region60
        $region59: #{tpu_custom_call.1} parent=47 // pred_region
          %p513 = scmp.lt.s32.totalorder %s25, 1
          %s514 = scalar_select %p513, %s25, 1
          %s515 = smul.addr %s514, 4
          %s516 = smul.addr %s515, 4
          %s517 = scalar_lea.vmem %s6, %s516
        $region60: #{tpu_custom_call.1} parent=47 // pred_fallthru
          _
        // Predicated region
        $region61: #{tpu_custom_call.1} parent=47 // pred_check
          %p518 = pneg %p207
        $region62: #{tpu_custom_call.1} parent=47 // pred_check_branch
          %520 = sbr.rel (%p518) target = $region64
        $region63: #{tpu_custom_call.1} parent=47 // pred_region
          %p521 = scmp.lt.s32.totalorder %s25, 1
          %s522 = scalar_select %p521, %s25, 1
          %s523 = smul.addr %s522, 4
          %s524 = smul.addr %s523, 4
          %s525 = scalar_lea.vmem %s7, %s524
        $region64: #{tpu_custom_call.1} parent=47 // pred_fallthru
          _
        // Predicated region
        $region65: #{tpu_custom_call.1} parent=47 // pred_check
          %p526 = pneg %p233
        $region66: #{tpu_custom_call.1} parent=47 // pred_check_branch
          %528 = sbr.rel (%p526) target = $region68
        $region67: #{tpu_custom_call.1} parent=47 // pred_region
          %p529 = scmp.lt.s32.totalorder %s25, 1
          %s530 = scalar_select %p529, %s25, 1
          %s531 = smul.addr %s530, 8
          %s532 = smul.addr %s531, 4
          %s533 = scalar_lea.vmem %s8, %s532
        $region68: #{tpu_custom_call.1} parent=47 // pred_fallthru
          _
        // Predicated region
        $region69: #{tpu_custom_call.1} parent=47 // pred_check
          %p534 = pneg %p259
        $region70: #{tpu_custom_call.1} parent=47 // pred_check_branch
          %536 = sbr.rel (%p534) target = $region72
        $region71: #{tpu_custom_call.1} parent=47 // pred_region
          %s537 = sand.u32 %s25, 1
          %s538 = scalar_lea.sflag [#allocation5], %s537
          %s539 = sand.u32 %s249, 1
          %s540 = scalar_lea.vmem [#allocation13], %s539
          %s542 = ssub.s32 16, 16
          %543 = vsyncadd %s538, %s542
          %s544 = smul.addr %s25, 16
          %s545 = scalar_lea.hbm %s9, %s544
          %s547 = sshll.u32 %s540, 4
          %s548 = int_to_ptr.vmem [resolvable:$true] %s547
          %550 = dma.hbm_to_vmem [thread:$0]  %s545, 16, %s548, %s538
        $region72: #{tpu_custom_call.1} parent=47 // pred_fallthru
          _
        // Predicated region
        $region73: #{tpu_custom_call.1} parent=47 // pred_check
          %p551 = pneg %p285
        $region74: #{tpu_custom_call.1} parent=47 // pred_check_branch
          %553 = sbr.rel (%p551) target = $region76
        $region75: #{tpu_custom_call.1} parent=47 // pred_region
          %p554 = scmp.lt.s32.totalorder %s25, 1
          %s555 = scalar_select %p554, %s25, 1
          %s556 = smul.addr %s555, 8
          %s557 = scalar_lea.vmem %s10, %s556
        $region76: #{tpu_custom_call.1} parent=47 // pred_fallthru
          _
      $region48: #{tpu_custom_call.1} parent=5 // pred_fallthru
        _
      %p558 = scmp.le.s32.totalorder 1, %s25
      %p559 = scmp.lt.s32.totalorder %s25, 3
      %p560 = pnand %p558, %p559
      %p561 = pneg %p560
      // Predicated region
      $region77: #{tpu_custom_call.1} parent=5 // pred_check
        _
      $region78: #{tpu_custom_call.1} parent=5 // pred_check_branch
        %563 = sbr.rel (%p560) target = $region80
      $region79: #{tpu_custom_call.1} parent=5 // pred_region
        %s564 = ssub.s32 %s25, 1
        // Predicated region
        $region81: #{tpu_custom_call.1} parent=79 // pred_check
          %p565 = pneg %p46
        $region82: #{tpu_custom_call.1} parent=79 // pred_check_branch
          %567 = sbr.rel (%p565) target = $region84
        $region83: #{tpu_custom_call.1} parent=79 // pred_region
          %568 = dma.done [#allocation5], 128
        $region84: #{tpu_custom_call.1} parent=79 // pred_fallthru
          _
        // Predicated region
        $region85: #{tpu_custom_call.1} parent=79 // pred_check
          %p569 = pneg %p67
        $region86: #{tpu_custom_call.1} parent=79 // pred_check_branch
          %571 = sbr.rel (%p569) target = $region88
        $region87: #{tpu_custom_call.1} parent=79 // pred_region
          %572 = dma.done [#allocation8], 32
        $region88: #{tpu_custom_call.1} parent=79 // pred_fallthru
          _
        // Predicated region
        $region89: #{tpu_custom_call.1} parent=79 // pred_check
          %p573 = pneg %p88
        $region90: #{tpu_custom_call.1} parent=79 // pred_check_branch
          %575 = sbr.rel (%p573) target = $region92
        $region91: #{tpu_custom_call.1} parent=79 // pred_region
          %576 = dma.done [#allocation8], 16
        $region92: #{tpu_custom_call.1} parent=79 // pred_fallthru
          _
        // Predicated region
        $region93: #{tpu_custom_call.1} parent=79 // pred_check
          %p577 = pneg %p109
        $region94: #{tpu_custom_call.1} parent=79 // pred_check_branch
          %579 = sbr.rel (%p577) target = $region96
        $region95: #{tpu_custom_call.1} parent=79 // pred_region
          %580 = dma.done [#allocation11], 16
        $region96: #{tpu_custom_call.1} parent=79 // pred_fallthru
          _
        %s581 = sand.u32 %s30, 1
        %s582 = scalar_lea.sflag [#allocation5], %s581
        %s583 = sand.u32 %s148, 1
        %s584 = scalar_lea.vmem [#allocation12], %s583
        // Predicated region
        $region97: #{tpu_custom_call.1} parent=79 // pred_check
          %p585 = pneg %p161
        $region98: #{tpu_custom_call.1} parent=79 // pred_check_branch
          %587 = sbr.rel (%p585) target = $region100
        $region99: #{tpu_custom_call.1} parent=79 // pred_region
          %588 = dma.done %s582, 16
        $region100: #{tpu_custom_call.1} parent=79 // pred_fallthru
          _
        %s589 = sand.u32 %s30, 1
        %s590 = scalar_lea.sflag [#allocation5], %s589
        %s591 = sand.u32 %s252, 1
        %s592 = scalar_lea.vmem [#allocation13], %s591
        // Predicated region
        $region101: #{tpu_custom_call.1} parent=79 // pred_check
          %p593 = pneg %p265
        $region102: #{tpu_custom_call.1} parent=79 // pred_check_branch
          %595 = sbr.rel (%p593) target = $region104
        $region103: #{tpu_custom_call.1} parent=79 // pred_region
          %596 = dma.done %s590, 16
        $region104: #{tpu_custom_call.1} parent=79 // pred_fallthru
          _
        // Predicated region
        $region105: #{tpu_custom_call.1} parent=79 // pred_check
          %p597 = pneg %p354
        $region106: #{tpu_custom_call.1} parent=79 // pred_check_branch
          %599 = sbr.rel (%p597) target = $region108
        $region107: #{tpu_custom_call.1} parent=79 // pred_region
          %600 = dma.done [#allocation8], 256
        $region108: #{tpu_custom_call.1} parent=79 // pred_fallthru
          _
        %p601 = pneg %p46
        %p602 = pneg %p43
        %p603 = pneg %p67
        %p604 = pneg %p64
        %p605 = pneg %p88
        %p606 = pneg %p85
        %p607 = pneg %p109
        %p608 = pneg %p106
        %p609 = scmp.lt.s32.totalorder %s30, 1
        %s610 = scalar_select %p609, %s30, 1
        %s611 = smul.addr %s610, 4
        %s612 = smul.addr %s611, 4
        %s613 = scalar_lea.vmem %s4, %s612
        %p614 = pneg %p135
        %p615 = pneg %p132
        %s616 = sand.u32 %s30, 1
        %s617 = scalar_lea.sflag [#allocation5], %s616
        %s618 = sand.u32 %s148, 1
        %s619 = scalar_lea.vmem [#allocation12], %s618
        %p620 = pneg %p161
        %p621 = pneg %p158
        %p622 = scmp.lt.s32.totalorder %s30, 1
        %s623 = scalar_select %p622, %s30, 1
        %s624 = smul.addr %s623, 4
        %s625 = smul.addr %s624, 4
        %s626 = scalar_lea.vmem %s6, %s625
        %p627 = pneg %p187
        %p628 = pneg %p184
        %p629 = scmp.lt.s32.totalorder %s30, 1
        %s630 = scalar_select %p629, %s30, 1
        %s631 = smul.addr %s630, 4
        %s632 = smul.addr %s631, 4
        %s633 = scalar_lea.vmem %s7, %s632
        %p634 = pneg %p213
        %p635 = pneg %p210
        %p636 = scmp.lt.s32.totalorder %s30, 1
        %s637 = scalar_select %p636, %s30, 1
        %s638 = smul.addr %s637, 8
        %s639 = smul.addr %s638, 4
        %s640 = scalar_lea.vmem %s8, %s639
        %p641 = pneg %p239
        %p642 = pneg %p236
        %s643 = sand.u32 %s30, 1
        %s644 = scalar_lea.sflag [#allocation5], %s643
        %s645 = sand.u32 %s252, 1
        %s646 = scalar_lea.vmem [#allocation13], %s645
        %p647 = pneg %p265
        %p648 = pneg %p262
        %p649 = scmp.lt.s32.totalorder %s30, 1
        %s650 = scalar_select %p649, %s30, 1
        %s651 = smul.addr %s650, 8
        %s652 = scalar_lea.vmem %s10, %s651
        %p653 = pneg %p291
        %p654 = pneg %p288
        %p655 = pneg %p312
        %p656 = pneg %p309
        %p657 = pneg %p333
        %p658 = pneg %p330
        %p659 = pneg %p354
        %p660 = pneg %p351
        %p661 = pneg %p375
        %p662 = pneg %p372
        %p663 = pneg %p396
        %p664 = pneg %p393
        %p665 = scmp.lt.s32.totalorder %s30, 1
        %s666 = scalar_select %p665, %s30, 1
        %s667 = smul.addr %s666, 4
        %s668 = smul.addr %s667, 4
        %s669 = scalar_lea.vmem %s4, %s668
        %p670 = scmp.lt.s32.totalorder %s30, 1
        %s671 = scalar_select %p670, %s30, 1
        %s672 = smul.addr %s671, 4
        %s673 = smul.addr %s672, 4
        %s674 = scalar_lea.vmem %s6, %s673
        %p675 = scmp.lt.s32.totalorder %s30, 1
        %s676 = scalar_select %p675, %s30, 1
        %s677 = smul.addr %s676, 4
        %s678 = smul.addr %s677, 4
        %s679 = scalar_lea.vmem %s7, %s678
        %p680 = scmp.lt.s32.totalorder %s30, 1
        %s681 = scalar_select %p680, %s30, 1
        %s682 = smul.addr %s681, 8
        %s683 = smul.addr %s682, 4
        %s684 = scalar_lea.vmem %s8, %s683
        %p685 = scmp.lt.s32.totalorder %s30, 1
        %s686 = scalar_select %p685, %s30, 1
        %s687 = smul.addr %s686, 8
        %s688 = scalar_lea.vmem %s10, %s687
        %p690 = scmp.eq.s32.totalorder %s30, 0
        // Predicated region
        $region109: #{tpu_custom_call.1} parent=79 // pred_check
          %p691 = pneg %p690
        $region110: #{tpu_custom_call.1} parent=79 // pred_check_branch
          %693 = sbr.rel (%p691) target = $region112
        $region111: #{tpu_custom_call.1} parent=79 // pred_region
          %v694 = vld [vmem:[#allocation4] sm:$0xf]
          %v695 = vld [vmem:[#allocation4 + $0x4] sm:$0xf]
          %v696 = vunpack.c.l.bf16 %v694
          %v697 = vunpack.c.l.bf16 %v695
          %v698 = vld [vmem:[#allocation9] sm:$0x1]
          %v699 = vld [vmem:[#allocation10] sm:$0x1]
          %vm700 = vcmask 261120
          %v701 = vsel %vm700, %v696, 0.0
          %702 = vadd.xlane.f32.xlu0 %v701
          %v703 = vpop.xlane.xlu0 %702
          %v704 = vsel %vm700, %v697, 0.0
          %705 = vadd.xlane.f32.xlu0 %v704
          %v706 = vpop.xlane.xlu0 %705
          %v707 = vrcp.pop 32.0
          %v708 = vmul.f32 %v703, %v707
          %v709 = vmul.f32 %v706, %v707
          %v710 = vsub.f32 %v696, %v708
          %v711 = vsub.f32 %v697, %v709
          %v712 = vmul.f32 %v710, %v710
          %v713 = vmul.f32 %v711, %v711
          %v714 = vsel %vm700, %v712, 0.0
          %715 = vadd.xlane.f32.xlu0 %v714
          %v716 = vpop.xlane.xlu0 %715
          %v717 = vsel %vm700, %v713, 0.0
          %718 = vadd.xlane.f32.xlu0 %v717
          %v719 = vpop.xlane.xlu0 %718
          %v720 = vmul.f32 %v716, %v707
          %v721 = vmul.f32 %v719, %v707
          %v722 = vadd.f32 %v720, 1e-12
          %v723 = vadd.f32 %v721, 1e-12
          %v724 = vrsqrt.pop %v722
          %v725 = vrsqrt.pop %v723
          %v726 = vmul.f32 %v710, %v724
          %v727 = vmul.f32 %v711, %v725
          %v729 = vlaneseq
          %v730 = vshrl.u32 %v729, 7
          %v731 = vsub.s32 0, %v730
          %v732 = vrot.slane %v698, %v731
          %v734 = vmul.f32 %v726, %v732
          %v735 = vmul.f32 %v727, %v732
          %v737 = vlaneseq
          %v738 = vshrl.u32 %v737, 7
          %v739 = vsub.s32 0, %v738
          %v740 = vrot.slane %v699, %v739
          %v742 = vadd.f32 %v734, %v740
          %v743 = vadd.f32 %v735, %v740
          %744 = vst.msk [vmem:[#allocation2] sm:$0xff] %vm700, %v742
          %745 = vst.msk [vmem:[#allocation2 + $0x8] sm:$0xff] %vm700, %v743
        $region112: #{tpu_custom_call.1} parent=79 // pred_fallthru
          _
        %v746 = vld [vmem:[#allocation2] sm:$0xff]
        %v747 = vld [vmem:[#allocation2 + $0x8] sm:$0xff]
        %v748 = vpack.c.bf16 %v747, %v746
        %v749 = vld [vmem:[%s688] sm:$0x3f]
        %v750 = vld [vmem:[%s669] sm:$0xf]
        %v751 = vld [vmem:[%s669 + $0x4] sm:$0xf]
        %v752 = vld [vmem:[%s669 + $0x8] sm:$0xf]
        %v753 = vld [vmem:[%s669 + $0xc] sm:$0xf]
        %v754 = vld [vmem:[%s584] sm:$0x1]
        %v756 = vlaneseq
        %v757 = vshrl.u32 %v756, 7
        %v758 = vsub.s32 0, %v757
        %v759 = vrot.slane %v754, %v758
        %v765 = vunpack.c.l.b16 %v750
        %v766 = vunpack.c.l.b16 %v751
        %v767 = vunpack.c.l.b16 %v752
        %v768 = vunpack.c.l.b16 %v753
        %v769 = vpack.c.b16 %v766, %v765
        %v770 = vpack.c.b16 %v768, %v767
        %vm773 = vcmask 261120
        %v775 = vsel %vm773, %v748, 0
        %777 = vmatprep.subr.bf16.mxu0 0
        %778 = vmatpush1.bf16.msra.mxu0 0
        %779 = vmatprep.subr.bf16.mxu0 0
        %780 = vmatpush1.bf16.msra.mxu0 0
        %781 = vmatprep.subr.bf16.mxu0 0
        %782 = vmatpush1.bf16.msra.mxu0 0
        %783 = vmatprep.subr.bf16.mxu0 0
        %784 = vmatpush1.bf16.msra.mxu0 0
        %785 = vmatprep.subr.bf16.mxu0 0
        %786 = vmatpush1.bf16.msra.mxu0 0
        %787 = vmatprep.subr.bf16.mxu0 0
        %788 = vmatpush1.bf16.msra.mxu0 0
        %789 = vmatprep.subr.bf16.mxu0 0
        %790 = vmatpush1.bf16.msra.mxu0 %v770
        %791 = vmatprep.subr.bf16.mxu0 0
        %792 = vmatpush1.bf16.msra.mxu0 %v769
        %793 = vmatprep.subr.bf16.mxu0 0
        %794 = vmatpush2.bf16.msra.mxu0 0
        %795 = vmatprep.subr.bf16.mxu0 0
        %796 = vmatpush2.bf16.msra.mxu0 0
        %797 = vmatprep.subr.bf16.mxu0 0
        %798 = vmatpush2.bf16.msra.mxu0 0
        %799 = vmatprep.subr.bf16.mxu0 0
        %800 = vmatpush2.bf16.msra.mxu0 0
        %801 = vmatprep.subr.bf16.mxu0 0
        %802 = vmatpush2.bf16.msra.mxu0 0
        %803 = vmatprep.subr.bf16.mxu0 0
        %804 = vmatpush2.bf16.msra.mxu0 0
        %805 = vmatprep.subr.bf16.mxu0 0
        %806 = vmatpush2.bf16.msra.mxu0 0
        %807 = vmatprep.subr.bf16.mxu0 0
        %808 = vmatpush2.bf16.msra.mxu0 0
        %809 = vmatprep.mubr.bf16.mxu0 0
        %810 = vmatmul.mubr.bf16.gmra.mxu0 %v775
        %v811 = vpop.f32.mrf.mxu0
        %v812 = vadd.f32 %v759, %v811
        %v813 = vpop.f32.mrf.mxu0
        %v814 = vpop.f32.mrf.mxu0
        %v815 = vadd.f32 %v759, %v814
        %v816 = vpop.f32.mrf.mxu0
        %817 = vdwg.mxu0
        %v818 = vpack.c.bf16 %v815, %v812
        %v819 = vld [vmem:[#allocation7] sm:$0x1]
        %v820 = vld [vmem:[#allocation7 + $0x1] sm:$0x1]
        %v822 = vunpack.c.l.b16 %v818
        %v823 = vunpack.c.h.b16 %v818
        %v824 = vpack.c.b16 %v822, %v822
        %v825 = vpack.c.b16 %v823, %v823
        %v828 = vlaneseq
        %v829 = vshrl.u32 %v828, 7
        %v830 = vsub.s32 0, %v829
        %v831 = vrot.slane %v819, %v830
        %v832 = vlaneseq
        %v833 = vshrl.u32 %v832, 7
        %v834 = vsub.s32 0, %v833
        %v835 = vrot.slane %v820, %v834
        %838 = vrot.lane.b32.xlu0 %v824, 96
        %v839 = vpop.permute.xlu0 %838
        %vm840 = vcmask 64512
        %v842 = vsel %vm840, %v824, 0
        %v845 = vsel %vm840, %v839, 0
        %847 = vmatprep.subr.bf16.mxu0 0
        %848 = vmatpush1.bf16.xpose.msra.mxu0 0
        %849 = vmatprep.subr.bf16.mxu0 0
        %850 = vmatpush1.bf16.xpose.msra.mxu0 0
        %851 = vmatprep.subr.bf16.mxu0 0
        %852 = vmatpush1.bf16.xpose.msra.mxu0 0
        %853 = vmatprep.subr.bf16.mxu0 0
        %854 = vmatpush1.bf16.xpose.msra.mxu0 0
        %855 = vmatprep.subr.bf16.mxu0 0
        %856 = vmatpush1.bf16.xpose.msra.mxu0 0
        %857 = vmatprep.subr.bf16.mxu0 0
        %858 = vmatpush1.bf16.xpose.msra.mxu0 0
        %859 = vmatprep.subr.bf16.mxu0 0
        %860 = vmatpush1.bf16.xpose.msra.mxu0 0
        %861 = vmatprep.subr.bf16.mxu0 0
        %862 = vmatpush1.bf16.xpose.msra.mxu0 %v845
        %863 = vmatprep.subr.bf16.mxu0 0
        %864 = vmatpush2.bf16.xpose.msra.mxu0 0
        %865 = vmatprep.subr.bf16.mxu0 0
        %866 = vmatpush2.bf16.xpose.msra.mxu0 0
        %867 = vmatprep.subr.bf16.mxu0 0
        %868 = vmatpush2.bf16.xpose.msra.mxu0 0
        %869 = vmatprep.subr.bf16.mxu0 0
        %870 = vmatpush2.bf16.xpose.msra.mxu0 0
        %871 = vmatprep.subr.bf16.mxu0 0
        %872 = vmatpush2.bf16.xpose.msra.mxu0 0
        %873 = vmatprep.subr.bf16.mxu0 0
        %874 = vmatpush2.bf16.xpose.msra.mxu0 0
        %875 = vmatprep.subr.bf16.mxu0 0
        %876 = vmatpush2.bf16.xpose.msra.mxu0 0
        %877 = vmatprep.subr.bf16.mxu0 0
        %878 = vmatpush2.bf16.xpose.msra.mxu0 0
        %879 = vmatprep.mubr.bf16.mxu0 0
        %880 = vmatmul.mubr.bf16.gmra.mxu0 %v842
        %v881 = vpop.f32.mrf.mxu0
        %v882 = vadd.f32 %v831, %v881
        %v883 = vpop.f32.mrf.mxu0
        %v884 = vpop.f32.mrf.mxu0
        %v885 = vpop.f32.mrf.mxu0
        %886 = vdwg.mxu0
        %887 = vrot.lane.b32.xlu0 %v825, 96
        %v888 = vpop.permute.xlu0 %887
        %v890 = vsel %vm840, %v825, 0
        %v893 = vsel %vm840, %v888, 0
        %895 = vmatprep.subr.bf16.mxu0 0
        %896 = vmatpush1.bf16.xpose.msra.mxu0 0
        %897 = vmatprep.subr.bf16.mxu0 0
        %898 = vmatpush1.bf16.xpose.msra.mxu0 0
        %899 = vmatprep.subr.bf16.mxu0 0
        %900 = vmatpush1.bf16.xpose.msra.mxu0 0
        %901 = vmatprep.subr.bf16.mxu0 0
        %902 = vmatpush1.bf16.xpose.msra.mxu0 0
        %903 = vmatprep.subr.bf16.mxu0 0
        %904 = vmatpush1.bf16.xpose.msra.mxu0 0
        %905 = vmatprep.subr.bf16.mxu0 0
        %906 = vmatpush1.bf16.xpose.msra.mxu0 0
        %907 = vmatprep.subr.bf16.mxu0 0
        %908 = vmatpush1.bf16.xpose.msra.mxu0 0
        %909 = vmatprep.subr.bf16.mxu0 0
        %910 = vmatpush1.bf16.xpose.msra.mxu0 %v893
        %911 = vmatprep.subr.bf16.mxu0 0
        %912 = vmatpush2.bf16.xpose.msra.mxu0 0
        %913 = vmatprep.subr.bf16.mxu0 0
        %914 = vmatpush2.bf16.xpose.msra.mxu0 0
        %915 = vmatprep.subr.bf16.mxu0 0
        %916 = vmatpush2.bf16.xpose.msra.mxu0 0
        %917 = vmatprep.subr.bf16.mxu0 0
        %918 = vmatpush2.bf16.xpose.msra.mxu0 0
        %919 = vmatprep.subr.bf16.mxu0 0
        %920 = vmatpush2.bf16.xpose.msra.mxu0 0
        %921 = vmatprep.subr.bf16.mxu0 0
        %922 = vmatpush2.bf16.xpose.msra.mxu0 0
        %923 = vmatprep.subr.bf16.mxu0 0
        %924 = vmatpush2.bf16.xpose.msra.mxu0 0
        %925 = vmatprep.subr.bf16.mxu0 0
        %926 = vmatpush2.bf16.xpose.msra.mxu0 0
        %927 = vmatprep.mubr.bf16.mxu0 0
        %928 = vmatmul.mubr.bf16.gmra.mxu0 %v890
        %v929 = vpop.f32.mrf.mxu0
        %v930 = vadd.f32 %v835, %v929
        %v931 = vpop.f32.mrf.mxu0
        %v932 = vpop.f32.mrf.mxu0
        %v933 = vpop.f32.mrf.mxu0
        %934 = vdwg.mxu0
        %v935 = vsel %vm840, %v882, -inf
        %936 = vmax.xlane.f32.xlu0 %v935
        %v937 = vpop.xlane.xlu0 %936
        %v938 = vsel %vm840, %v930, -inf
        %939 = vmax.xlane.f32.xlu0 %v938
        %v940 = vpop.xlane.xlu0 %939
        %v941 = vsub.f32 %v882, %v937
        %v942 = vsub.f32 %v930, %v940
        %v943 = vmul.f32 %v941, 1.442695
        %v944 = vpow.pop %v943
        %v945 = vmul.f32 %v942, 1.442695
        %v946 = vpow.pop %v945
        %v947 = vsel %vm840, %v944, 0.0
        %948 = vadd.xlane.f32.xlu0 %v947
        %v949 = vpop.xlane.xlu0 %948
        %v950 = vsel %vm840, %v946, 0.0
        %951 = vadd.xlane.f32.xlu0 %v950
        %v952 = vpop.xlane.xlu0 %951
        %v953 = vrcp.pop %v949
        %v954 = vrcp.pop %v952
        %v955 = vmul.f32 %v944, %v953
        %v956 = vmul.f32 %v946, %v954
        %v957 = vpack.c.bf16 %v955, %v955
        %v958 = vpack.c.bf16 %v956, %v956
        %959 = vrot.lane.b32.xlu0 %v824, 64
        %v960 = vpop.permute.xlu0 %959
        %v962 = vsel %vm840, %v957, 0
        %vm964 = vcmask 1043456
        %v966 = vsel %vm964, %v960, 0
        %968 = vmatprep.subr.bf16.mxu0 0
        %969 = vmatpush1.bf16.msra.mxu0 0
        %970 = vmatprep.subr.bf16.mxu0 0
        %971 = vmatpush1.bf16.msra.mxu0 0
        %972 = vmatprep.subr.bf16.mxu0 0
        %973 = vmatpush1.bf16.msra.mxu0 0
        %974 = vmatprep.subr.bf16.mxu0 0
        %975 = vmatpush1.bf16.msra.mxu0 0
        %976 = vmatprep.subr.bf16.mxu0 0
        %977 = vmatpush1.bf16.msra.mxu0 0
        %978 = vmatprep.subr.bf16.mxu0 0
        %979 = vmatpush1.bf16.msra.mxu0 0
        %980 = vmatprep.subr.bf16.mxu0 0
        %981 = vmatpush1.bf16.msra.mxu0 0
        %982 = vmatprep.subr.bf16.mxu0 0
        %983 = vmatpush1.bf16.msra.mxu0 %v966
        %984 = vmatprep.subr.bf16.mxu0 0
        %985 = vmatpush2.bf16.msra.mxu0 0
        %986 = vmatprep.subr.bf16.mxu0 0
        %987 = vmatpush2.bf16.msra.mxu0 0
        %988 = vmatprep.subr.bf16.mxu0 0
        %989 = vmatpush2.bf16.msra.mxu0 0
        %990 = vmatprep.subr.bf16.mxu0 0
        %991 = vmatpush2.bf16.msra.mxu0 0
        %992 = vmatprep.subr.bf16.mxu0 0
        %993 = vmatpush2.bf16.msra.mxu0 0
        %994 = vmatprep.subr.bf16.mxu0 0
        %995 = vmatpush2.bf16.msra.mxu0 0
        %996 = vmatprep.subr.bf16.mxu0 0
        %997 = vmatpush2.bf16.msra.mxu0 0
        %998 = vmatprep.subr.bf16.mxu0 0
        %999 = vmatpush2.bf16.msra.mxu0 0
        %1000 = vmatprep.mubr.bf16.mxu0 0
        %1001 = vmatmul.mubr.bf16.gmra.mxu0 %v962
        %v1002 = vpop.f32.mrf.mxu0
        %v1003 = vadd.f32 0.0, %v1002
        %v1004 = vpop.f32.mrf.mxu0
        %v1005 = vpop.f32.mrf.mxu0
        %v1006 = vpop.f32.mrf.mxu0
        %1007 = vdwg.mxu0
        %1008 = vrot.lane.b32.xlu0 %v825, 64
        %v1009 = vpop.permute.xlu0 %1008
        %v1011 = vsel %vm840, %v958, 0
        %v1014 = vsel %vm964, %v1009, 0
        %1016 = vmatprep.subr.bf16.mxu0 0
        %1017 = vmatpush1.bf16.msra.mxu0 0
        %1018 = vmatprep.subr.bf16.mxu0 0
        %1019 = vmatpush1.bf16.msra.mxu0 0
        %1020 = vmatprep.subr.bf16.mxu0 0
        %1021 = vmatpush1.bf16.msra.mxu0 0
        %1022 = vmatprep.subr.bf16.mxu0 0
        %1023 = vmatpush1.bf16.msra.mxu0 0
        %1024 = vmatprep.subr.bf16.mxu0 0
        %1025 = vmatpush1.bf16.msra.mxu0 0
        %1026 = vmatprep.subr.bf16.mxu0 0
        %1027 = vmatpush1.bf16.msra.mxu0 0
        %1028 = vmatprep.subr.bf16.mxu0 0
        %1029 = vmatpush1.bf16.msra.mxu0 0
        %1030 = vmatprep.subr.bf16.mxu0 0
        %1031 = vmatpush1.bf16.msra.mxu0 %v1014
        %1032 = vmatprep.subr.bf16.mxu0 0
        %1033 = vmatpush2.bf16.msra.mxu0 0
        %1034 = vmatprep.subr.bf16.mxu0 0
        %1035 = vmatpush2.bf16.msra.mxu0 0
        %1036 = vmatprep.subr.bf16.mxu0 0
        %1037 = vmatpush2.bf16.msra.mxu0 0
        %1038 = vmatprep.subr.bf16.mxu0 0
        %1039 = vmatpush2.bf16.msra.mxu0 0
        %1040 = vmatprep.subr.bf16.mxu0 0
        %1041 = vmatpush2.bf16.msra.mxu0 0
        %1042 = vmatprep.subr.bf16.mxu0 0
        %1043 = vmatpush2.bf16.msra.mxu0 0
        %1044 = vmatprep.subr.bf16.mxu0 0
        %1045 = vmatpush2.bf16.msra.mxu0 0
        %1046 = vmatprep.subr.bf16.mxu0 0
        %1047 = vmatpush2.bf16.msra.mxu0 0
        %1048 = vmatprep.mubr.bf16.mxu0 0
        %1049 = vmatmul.mubr.bf16.gmra.mxu0 %v1011
        %v1050 = vpop.f32.mrf.mxu0
        %v1051 = vadd.f32 0.0, %v1050
        %v1052 = vpop.f32.mrf.mxu0
        %v1053 = vpop.f32.mrf.mxu0
        %v1054 = vpop.f32.mrf.mxu0
        %1055 = vdwg.mxu0
        %v1056 = vpack.c.bf16 %v1051, %v1003
        %v1058 = vunpack.c.l.b16 %v1056
        %v1059 = vunpack.c.h.b16 %v1056
        %v1060 = vpack.c.b16 %v1058, %v1058
        %v1061 = vpack.c.b16 %v1059, %v1059
        %vm1064 = vcmask 60416
        %1065 = vst.msk [vmem:[#allocation3] sm:$0xf] %vm1064, %v1060
        %1066 = vst.msk [vmem:[#allocation3 + $0x4] sm:$0xf] %vm1064, %v1061
        %1067 = vrot.lane.b32.xlu0 %v824, 120
        %v1068 = vpop.permute.xlu0 %1067
        %1069 = vrot.lane.b32.xlu0 %v824, 88
        %v1070 = vpop.permute.xlu0 %1069
        %v1072 = vsel %vm840, %v1068, 0
        %v1075 = vsel %vm840, %v1070, 0
        %1077 = vmatprep.subr.bf16.mxu0 0
        %1078 = vmatpush1.bf16.xpose.msra.mxu0 0
        %1079 = vmatprep.subr.bf16.mxu0 0
        %1080 = vmatpush1.bf16.xpose.msra.mxu0 0
        %1081 = vmatprep.subr.bf16.mxu0 0
        %1082 = vmatpush1.bf16.xpose.msra.mxu0 0
        %1083 = vmatprep.subr.bf16.mxu0 0
        %1084 = vmatpush1.bf16.xpose.msra.mxu0 0
        %1085 = vmatprep.subr.bf16.mxu0 0
        %1086 = vmatpush1.bf16.xpose.msra.mxu0 0
        %1087 = vmatprep.subr.bf16.mxu0 0
        %1088 = vmatpush1.bf16.xpose.msra.mxu0 0
        %1089 = vmatprep.subr.bf16.mxu0 0
        %1090 = vmatpush1.bf16.xpose.msra.mxu0 0
        %1091 = vmatprep.subr.bf16.mxu0 0
        %1092 = vmatpush1.bf16.xpose.msra.mxu0 %v1075
        %1093 = vmatprep.subr.bf16.mxu0 0
        %1094 = vmatpush2.bf16.xpose.msra.mxu0 0
        %1095 = vmatprep.subr.bf16.mxu0 0
        %1096 = vmatpush2.bf16.xpose.msra.mxu0 0
        %1097 = vmatprep.subr.bf16.mxu0 0
        %1098 = vmatpush2.bf16.xpose.msra.mxu0 0
        %1099 = vmatprep.subr.bf16.mxu0 0
        %1100 = vmatpush2.bf16.xpose.msra.mxu0 0
        %1101 = vmatprep.subr.bf16.mxu0 0
        %1102 = vmatpush2.bf16.xpose.msra.mxu0 0
        %1103 = vmatprep.subr.bf16.mxu0 0
        %1104 = vmatpush2.bf16.xpose.msra.mxu0 0
        %1105 = vmatprep.subr.bf16.mxu0 0
        %1106 = vmatpush2.bf16.xpose.msra.mxu0 0
        %1107 = vmatprep.subr.bf16.mxu0 0
        %1108 = vmatpush2.bf16.xpose.msra.mxu0 0
        %1109 = vmatprep.mubr.bf16.mxu0 0
        %1110 = vmatmul.mubr.bf16.gmra.mxu0 %v1072
        %v1111 = vpop.f32.mrf.mxu0
        %v1112 = vadd.f32 %v831, %v1111
        %v1113 = vpop.f32.mrf.mxu0
        %v1114 = vpop.f32.mrf.mxu0
        %v1115 = vpop.f32.mrf.mxu0
        %1116 = vdwg.mxu0
        %1117 = vrot.lane.b32.xlu0 %v825, 120
        %v1118 = vpop.permute.xlu0 %1117
        %1119 = vrot.lane.b32.xlu0 %v825, 88
        %v1120 = vpop.permute.xlu0 %1119
        %v1122 = vsel %vm840, %v1118, 0
        %v1125 = vsel %vm840, %v1120, 0
        %1127 = vmatprep.subr.bf16.mxu0 0
        %1128 = vmatpush1.bf16.xpose.msra.mxu0 0
        %1129 = vmatprep.subr.bf16.mxu0 0
        %1130 = vmatpush1.bf16.xpose.msra.mxu0 0
        %1131 = vmatprep.subr.bf16.mxu0 0
        %1132 = vmatpush1.bf16.xpose.msra.mxu0 0
        %1133 = vmatprep.subr.bf16.mxu0 0
        %1134 = vmatpush1.bf16.xpose.msra.mxu0 0
        %1135 = vmatprep.subr.bf16.mxu0 0
        %1136 = vmatpush1.bf16.xpose.msra.mxu0 0
        %1137 = vmatprep.subr.bf16.mxu0 0
        %1138 = vmatpush1.bf16.xpose.msra.mxu0 0
        %1139 = vmatprep.subr.bf16.mxu0 0
        %1140 = vmatpush1.bf16.xpose.msra.mxu0 0
        %1141 = vmatprep.subr.bf16.mxu0 0
        %1142 = vmatpush1.bf16.xpose.msra.mxu0 %v1125
        %1143 = vmatprep.subr.bf16.mxu0 0
        %1144 = vmatpush2.bf16.xpose.msra.mxu0 0
        %1145 = vmatprep.subr.bf16.mxu0 0
        %1146 = vmatpush2.bf16.xpose.msra.mxu0 0
        %1147 = vmatprep.subr.bf16.mxu0 0
        %1148 = vmatpush2.bf16.xpose.msra.mxu0 0
        %1149 = vmatprep.subr.bf16.mxu0 0
        %1150 = vmatpush2.bf16.xpose.msra.mxu0 0
        %1151 = vmatprep.subr.bf16.mxu0 0
        %1152 = vmatpush2.bf16.xpose.msra.mxu0 0
        %1153 = vmatprep.subr.bf16.mxu0 0
        %1154 = vmatpush2.bf16.xpose.msra.mxu0 0
        %1155 = vmatprep.subr.bf16.mxu0 0
        %1156 = vmatpush2.bf16.xpose.msra.mxu0 0
        %1157 = vmatprep.subr.bf16.mxu0 0
        %1158 = vmatpush2.bf16.xpose.msra.mxu0 0
        %1159 = vmatprep.mubr.bf16.mxu0 0
        %1160 = vmatmul.mubr.bf16.gmra.mxu0 %v1122
        %v1161 = vpop.f32.mrf.mxu0
        %v1162 = vadd.f32 %v835, %v1161
        %v1163 = vpop.f32.mrf.mxu0
        %v1164 = vpop.f32.mrf.mxu0
        %v1165 = vpop.f32.mrf.mxu0
        %1166 = vdwg.mxu0
        %v1167 = vsel %vm840, %v1112, -inf
        %1168 = vmax.xlane.f32.xlu0 %v1167
        %v1169 = vpop.xlane.xlu0 %1168
        %v1170 = vsel %vm840, %v1162, -inf
        %1171 = vmax.xlane.f32.xlu0 %v1170
        %v1172 = vpop.xlane.xlu0 %1171
        %v1173 = vsub.f32 %v1112, %v1169
        %v1174 = vsub.f32 %v1162, %v1172
        %v1175 = vmul.f32 %v1173, 1.442695
        %v1176 = vpow.pop %v1175
        %v1177 = vmul.f32 %v1174, 1.442695
        %v1178 = vpow.pop %v1177
        %v1179 = vsel %vm840, %v1176, 0.0
        %1180 = vadd.xlane.f32.xlu0 %v1179
        %v1181 = vpop.xlane.xlu0 %1180
        %v1182 = vsel %vm840, %v1178, 0.0
        %1183 = vadd.xlane.f32.xlu0 %v1182
        %v1184 = vpop.xlane.xlu0 %1183
        %v1185 = vrcp.pop %v1181
        %v1186 = vrcp.pop %v1184
        %v1187 = vmul.f32 %v1176, %v1185
        %v1188 = vmul.f32 %v1178, %v1186
        %v1189 = vpack.c.bf16 %v1187, %v1187
        %v1190 = vpack.c.bf16 %v1188, %v1188
        %1191 = vrot.lane.b32.xlu0 %v824, 56
        %v1192 = vpop.permute.xlu0 %1191
        %v1194 = vsel %vm840, %v1189, 0
        %v1197 = vsel %vm964, %v1192, 0
        %1199 = vmatprep.subr.bf16.mxu0 0
        %1200 = vmatpush1.bf16.msra.mxu0 0
        %1201 = vmatprep.subr.bf16.mxu0 0
        %1202 = vmatpush1.bf16.msra.mxu0 0
        %1203 = vmatprep.subr.bf16.mxu0 0
        %1204 = vmatpush1.bf16.msra.mxu0 0
        %1205 = vmatprep.subr.bf16.mxu0 0
        %1206 = vmatpush1.bf16.msra.mxu0 0
        %1207 = vmatprep.subr.bf16.mxu0 0
        %1208 = vmatpush1.bf16.msra.mxu0 0
        %1209 = vmatprep.subr.bf16.mxu0 0
        %1210 = vmatpush1.bf16.msra.mxu0 0
        %1211 = vmatprep.subr.bf16.mxu0 0
        %1212 = vmatpush1.bf16.msra.mxu0 0
        %1213 = vmatprep.subr.bf16.mxu0 0
        %1214 = vmatpush1.bf16.msra.mxu0 %v1197
        %1215 = vmatprep.subr.bf16.mxu0 0
        %1216 = vmatpush2.bf16.msra.mxu0 0
        %1217 = vmatprep.subr.bf16.mxu0 0
        %1218 = vmatpush2.bf16.msra.mxu0 0
        %1219 = vmatprep.subr.bf16.mxu0 0
        %1220 = vmatpush2.bf16.msra.mxu0 0
        %1221 = vmatprep.subr.bf16.mxu0 0
        %1222 = vmatpush2.bf16.msra.mxu0 0
        %1223 = vmatprep.subr.bf16.mxu0 0
        %1224 = vmatpush2.bf16.msra.mxu0 0
        %1225 = vmatprep.subr.bf16.mxu0 0
        %1226 = vmatpush2.bf16.msra.mxu0 0
        %1227 = vmatprep.subr.bf16.mxu0 0
        %1228 = vmatpush2.bf16.msra.mxu0 0
        %1229 = vmatprep.subr.bf16.mxu0 0
        %1230 = vmatpush2.bf16.msra.mxu0 0
        %1231 = vmatprep.mubr.bf16.mxu0 0
        %1232 = vmatmul.mubr.bf16.gmra.mxu0 %v1194
        %v1233 = vpop.f32.mrf.mxu0
        %v1234 = vadd.f32 0.0, %v1233
        %v1235 = vpop.f32.mrf.mxu0
        %v1236 = vpop.f32.mrf.mxu0
        %v1237 = vpop.f32.mrf.mxu0
        %1238 = vdwg.mxu0
        %1239 = vrot.lane.b32.xlu0 %v825, 56
        %v1240 = vpop.permute.xlu0 %1239
        %v1242 = vsel %vm840, %v1190, 0
        %v1245 = vsel %vm964, %v1240, 0
        %1247 = vmatprep.subr.bf16.mxu0 0
        %1248 = vmatpush1.bf16.msra.mxu0 0
        %1249 = vmatprep.subr.bf16.mxu0 0
        %1250 = vmatpush1.bf16.msra.mxu0 0
        %1251 = vmatprep.subr.bf16.mxu0 0
        %1252 = vmatpush1.bf16.msra.mxu0 0
        %1253 = vmatprep.subr.bf16.mxu0 0
        %1254 = vmatpush1.bf16.msra.mxu0 0
        %1255 = vmatprep.subr.bf16.mxu0 0
        %1256 = vmatpush1.bf16.msra.mxu0 0
        %1257 = vmatprep.subr.bf16.mxu0 0
        %1258 = vmatpush1.bf16.msra.mxu0 0
        %1259 = vmatprep.subr.bf16.mxu0 0
        %1260 = vmatpush1.bf16.msra.mxu0 0
        %1261 = vmatprep.subr.bf16.mxu0 0
        %1262 = vmatpush1.bf16.msra.mxu0 %v1245
        %1263 = vmatprep.subr.bf16.mxu0 0
        %1264 = vmatpush2.bf16.msra.mxu0 0
        %1265 = vmatprep.subr.bf16.mxu0 0
        %1266 = vmatpush2.bf16.msra.mxu0 0
        %1267 = vmatprep.subr.bf16.mxu0 0
        %1268 = vmatpush2.bf16.msra.mxu0 0
        %1269 = vmatprep.subr.bf16.mxu0 0
        %1270 = vmatpush2.bf16.msra.mxu0 0
        %1271 = vmatprep.subr.bf16.mxu0 0
        %1272 = vmatpush2.bf16.msra.mxu0 0
        %1273 = vmatprep.subr.bf16.mxu0 0
        %1274 = vmatpush2.bf16.msra.mxu0 0
        %1275 = vmatprep.subr.bf16.mxu0 0
        %1276 = vmatpush2.bf16.msra.mxu0 0
        %1277 = vmatprep.subr.bf16.mxu0 0
        %1278 = vmatpush2.bf16.msra.mxu0 0
        %1279 = vmatprep.mubr.bf16.mxu0 0
        %1280 = vmatmul.mubr.bf16.gmra.mxu0 %v1242
        %v1281 = vpop.f32.mrf.mxu0
        %v1282 = vadd.f32 0.0, %v1281
        %v1283 = vpop.f32.mrf.mxu0
        %v1284 = vpop.f32.mrf.mxu0
        %v1285 = vpop.f32.mrf.mxu0
        %1286 = vdwg.mxu0
        %v1287 = vpack.c.bf16 %v1282, %v1234
        %v1289 = vunpack.c.l.b16 %v1287
        %v1290 = vunpack.c.h.b16 %v1287
        %v1291 = vpack.c.b16 %v1289, %v1289
        %v1292 = vpack.c.b16 %v1290, %v1290
        %1293 = vrot.lane.b32.xlu0 %v1291, 8
        %v1294 = vpop.permute.xlu0 %1293
        %1295 = vrot.lane.b32.xlu0 %v1292, 8
        %v1296 = vpop.permute.xlu0 %1295
        %vm1299 = vcmask 126016
        %1300 = vst.msk [vmem:[#allocation3] sm:$0xf] %vm1299, %v1294
        %1301 = vst.msk [vmem:[#allocation3 + $0x4] sm:$0xf] %vm1299, %v1296
        %1302 = vrot.lane.b32.xlu0 %v824, 112
        %v1303 = vpop.permute.xlu0 %1302
        %1304 = vrot.lane.b32.xlu0 %v824, 80
        %v1305 = vpop.permute.xlu0 %1304
        %v1307 = vsel %vm840, %v1303, 0
        %v1310 = vsel %vm840, %v1305, 0
        %1312 = vmatprep.subr.bf16.mxu0 0
        %1313 = vmatpush1.bf16.xpose.msra.mxu0 0
        %1314 = vmatprep.subr.bf16.mxu0 0
        %1315 = vmatpush1.bf16.xpose.msra.mxu0 0
        %1316 = vmatprep.subr.bf16.mxu0 0
        %1317 = vmatpush1.bf16.xpose.msra.mxu0 0
        %1318 = vmatprep.subr.bf16.mxu0 0
        %1319 = vmatpush1.bf16.xpose.msra.mxu0 0
        %1320 = vmatprep.subr.bf16.mxu0 0
        %1321 = vmatpush1.bf16.xpose.msra.mxu0 0
        %1322 = vmatprep.subr.bf16.mxu0 0
        %1323 = vmatpush1.bf16.xpose.msra.mxu0 0
        %1324 = vmatprep.subr.bf16.mxu0 0
        %1325 = vmatpush1.bf16.xpose.msra.mxu0 0
        %1326 = vmatprep.subr.bf16.mxu0 0
        %1327 = vmatpush1.bf16.xpose.msra.mxu0 %v1310
        %1328 = vmatprep.subr.bf16.mxu0 0
        %1329 = vmatpush2.bf16.xpose.msra.mxu0 0
        %1330 = vmatprep.subr.bf16.mxu0 0
        %1331 = vmatpush2.bf16.xpose.msra.mxu0 0
        %1332 = vmatprep.subr.bf16.mxu0 0
        %1333 = vmatpush2.bf16.xpose.msra.mxu0 0
        %1334 = vmatprep.subr.bf16.mxu0 0
        %1335 = vmatpush2.bf16.xpose.msra.mxu0 0
        %1336 = vmatprep.subr.bf16.mxu0 0
        %1337 = vmatpush2.bf16.xpose.msra.mxu0 0
        %1338 = vmatprep.subr.bf16.mxu0 0
        %1339 = vmatpush2.bf16.xpose.msra.mxu0 0
        %1340 = vmatprep.subr.bf16.mxu0 0
        %1341 = vmatpush2.bf16.xpose.msra.mxu0 0
        %1342 = vmatprep.subr.bf16.mxu0 0
        %1343 = vmatpush2.bf16.xpose.msra.mxu0 0
        %1344 = vmatprep.mubr.bf16.mxu0 0
        %1345 = vmatmul.mubr.bf16.gmra.mxu0 %v1307
        %v1346 = vpop.f32.mrf.mxu0
        %v1347 = vadd.f32 %v831, %v1346
        %v1348 = vpop.f32.mrf.mxu0
        %v1349 = vpop.f32.mrf.mxu0
        %v1350 = vpop.f32.mrf.mxu0
        %1351 = vdwg.mxu0
        %1352 = vrot.lane.b32.xlu0 %v825, 112
        %v1353 = vpop.permute.xlu0 %1352
        %1354 = vrot.lane.b32.xlu0 %v825, 80
        %v1355 = vpop.permute.xlu0 %1354
        %v1357 = vsel %vm840, %v1353, 0
        %v1360 = vsel %vm840, %v1355, 0
        %1362 = vmatprep.subr.bf16.mxu0 0
        %1363 = vmatpush1.bf16.xpose.msra.mxu0 0
        %1364 = vmatprep.subr.bf16.mxu0 0
        %1365 = vmatpush1.bf16.xpose.msra.mxu0 0
        %1366 = vmatprep.subr.bf16.mxu0 0
        %1367 = vmatpush1.bf16.xpose.msra.mxu0 0
        %1368 = vmatprep.subr.bf16.mxu0 0
        %1369 = vmatpush1.bf16.xpose.msra.mxu0 0
        %1370 = vmatprep.subr.bf16.mxu0 0
        %1371 = vmatpush1.bf16.xpose.msra.mxu0 0
        %1372 = vmatprep.subr.bf16.mxu0 0
        %1373 = vmatpush1.bf16.xpose.msra.mxu0 0
        %1374 = vmatprep.subr.bf16.mxu0 0
        %1375 = vmatpush1.bf16.xpose.msra.mxu0 0
        %1376 = vmatprep.subr.bf16.mxu0 0
        %1377 = vmatpush1.bf16.xpose.msra.mxu0 %v1360
        %1378 = vmatprep.subr.bf16.mxu0 0
        %1379 = vmatpush2.bf16.xpose.msra.mxu0 0
        %1380 = vmatprep.subr.bf16.mxu0 0
        %1381 = vmatpush2.bf16.xpose.msra.mxu0 0
        %1382 = vmatprep.subr.bf16.mxu0 0
        %1383 = vmatpush2.bf16.xpose.msra.mxu0 0
        %1384 = vmatprep.subr.bf16.mxu0 0
        %1385 = vmatpush2.bf16.xpose.msra.mxu0 0
        %1386 = vmatprep.subr.bf16.mxu0 0
        %1387 = vmatpush2.bf16.xpose.msra.mxu0 0
        %1388 = vmatprep.subr.bf16.mxu0 0
        %1389 = vmatpush2.bf16.xpose.msra.mxu0 0
        %1390 = vmatprep.subr.bf16.mxu0 0
        %1391 = vmatpush2.bf16.xpose.msra.mxu0 0
        %1392 = vmatprep.subr.bf16.mxu0 0
        %1393 = vmatpush2.bf16.xpose.msra.mxu0 0
        %1394 = vmatprep.mubr.bf16.mxu0 0
        %1395 = vmatmul.mubr.bf16.gmra.mxu0 %v1357
        %v1396 = vpop.f32.mrf.mxu0
        %v1397 = vadd.f32 %v835, %v1396
        %v1398 = vpop.f32.mrf.mxu0
        %v1399 = vpop.f32.mrf.mxu0
        %v1400 = vpop.f32.mrf.mxu0
        %1401 = vdwg.mxu0
        %v1402 = vsel %vm840, %v1347, -inf
        %1403 = vmax.xlane.f32.xlu0 %v1402
        %v1404 = vpop.xlane.xlu0 %1403
        %v1405 = vsel %vm840, %v1397, -inf
        %1406 = vmax.xlane.f32.xlu0 %v1405
        %v1407 = vpop.xlane.xlu0 %1406
        %v1408 = vsub.f32 %v1347, %v1404
        %v1409 = vsub.f32 %v1397, %v1407
        %v1410 = vmul.f32 %v1408, 1.442695
        %v1411 = vpow.pop %v1410
        %v1412 = vmul.f32 %v1409, 1.442695
        %v1413 = vpow.pop %v1412
        %v1414 = vsel %vm840, %v1411, 0.0
        %1415 = vadd.xlane.f32.xlu0 %v1414
        %v1416 = vpop.xlane.xlu0 %1415
        %v1417 = vsel %vm840, %v1413, 0.0
        %1418 = vadd.xlane.f32.xlu0 %v1417
        %v1419 = vpop.xlane.xlu0 %1418
        %v1420 = vrcp.pop %v1416
        %v1421 = vrcp.pop %v1419
        %v1422 = vmul.f32 %v1411, %v1420
        %v1423 = vmul.f32 %v1413, %v1421
        %v1424 = vpack.c.bf16 %v1422, %v1422
        %v1425 = vpack.c.bf16 %v1423, %v1423
        %1426 = vrot.lane.b32.xlu0 %v824, 48
        %v1427 = vpop.permute.xlu0 %1426
        %v1429 = vsel %vm840, %v1424, 0
        %v1432 = vsel %vm964, %v1427, 0
        %1434 = vmatprep.subr.bf16.mxu0 0
        %1435 = vmatpush1.bf16.msra.mxu0 0
        %1436 = vmatprep.subr.bf16.mxu0 0
        %1437 = vmatpush1.bf16.msra.mxu0 0
        %1438 = vmatprep.subr.bf16.mxu0 0
        %1439 = vmatpush1.bf16.msra.mxu0 0
        %1440 = vmatprep.subr.bf16.mxu0 0
        %1441 = vmatpush1.bf16.msra.mxu0 0
        %1442 = vmatprep.subr.bf16.mxu0 0
        %1443 = vmatpush1.bf16.msra.mxu0 0
        %1444 = vmatprep.subr.bf16.mxu0 0
        %1445 = vmatpush1.bf16.msra.mxu0 0
        %1446 = vmatprep.subr.bf16.mxu0 0
        %1447 = vmatpush1.bf16.msra.mxu0 0
        %1448 = vmatprep.subr.bf16.mxu0 0
        %1449 = vmatpush1.bf16.msra.mxu0 %v1432
        %1450 = vmatprep.subr.bf16.mxu0 0
        %1451 = vmatpush2.bf16.msra.mxu0 0
        %1452 = vmatprep.subr.bf16.mxu0 0
        %1453 = vmatpush2.bf16.msra.mxu0 0
        %1454 = vmatprep.subr.bf16.mxu0 0
        %1455 = vmatpush2.bf16.msra.mxu0 0
        %1456 = vmatprep.subr.bf16.mxu0 0
        %1457 = vmatpush2.bf16.msra.mxu0 0
        %1458 = vmatprep.subr.bf16.mxu0 0
        %1459 = vmatpush2.bf16.msra.mxu0 0
        %1460 = vmatprep.subr.bf16.mxu0 0
        %1461 = vmatpush2.bf16.msra.mxu0 0
        %1462 = vmatprep.subr.bf16.mxu0 0
        %1463 = vmatpush2.bf16.msra.mxu0 0
        %1464 = vmatprep.subr.bf16.mxu0 0
        %1465 = vmatpush2.bf16.msra.mxu0 0
        %1466 = vmatprep.mubr.bf16.mxu0 0
        %1467 = vmatmul.mubr.bf16.gmra.mxu0 %v1429
        %v1468 = vpop.f32.mrf.mxu0
        %v1469 = vadd.f32 0.0, %v1468
        %v1470 = vpop.f32.mrf.mxu0
        %v1471 = vpop.f32.mrf.mxu0
        %v1472 = vpop.f32.mrf.mxu0
        %1473 = vdwg.mxu0
        %1474 = vrot.lane.b32.xlu0 %v825, 48
        %v1475 = vpop.permute.xlu0 %1474
        %v1477 = vsel %vm840, %v1425, 0
        %v1480 = vsel %vm964, %v1475, 0
        %1482 = vmatprep.subr.bf16.mxu0 0
        %1483 = vmatpush1.bf16.msra.mxu0 0
        %1484 = vmatprep.subr.bf16.mxu0 0
        %1485 = vmatpush1.bf16.msra.mxu0 0
        %1486 = vmatprep.subr.bf16.mxu0 0
        %1487 = vmatpush1.bf16.msra.mxu0 0
        %1488 = vmatprep.subr.bf16.mxu0 0
        %1489 = vmatpush1.bf16.msra.mxu0 0
        %1490 = vmatprep.subr.bf16.mxu0 0
        %1491 = vmatpush1.bf16.msra.mxu0 0
        %1492 = vmatprep.subr.bf16.mxu0 0
        %1493 = vmatpush1.bf16.msra.mxu0 0
        %1494 = vmatprep.subr.bf16.mxu0 0
        %1495 = vmatpush1.bf16.msra.mxu0 0
        %1496 = vmatprep.subr.bf16.mxu0 0
        %1497 = vmatpush1.bf16.msra.mxu0 %v1480
        %1498 = vmatprep.subr.bf16.mxu0 0
        %1499 = vmatpush2.bf16.msra.mxu0 0
        %1500 = vmatprep.subr.bf16.mxu0 0
        %1501 = vmatpush2.bf16.msra.mxu0 0
        %1502 = vmatprep.subr.bf16.mxu0 0
        %1503 = vmatpush2.bf16.msra.mxu0 0
        %1504 = vmatprep.subr.bf16.mxu0 0
        %1505 = vmatpush2.bf16.msra.mxu0 0
        %1506 = vmatprep.subr.bf16.mxu0 0
        %1507 = vmatpush2.bf16.msra.mxu0 0
        %1508 = vmatprep.subr.bf16.mxu0 0
        %1509 = vmatpush2.bf16.msra.mxu0 0
        %1510 = vmatprep.subr.bf16.mxu0 0
        %1511 = vmatpush2.bf16.msra.mxu0 0
        %1512 = vmatprep.subr.bf16.mxu0 0
        %1513 = vmatpush2.bf16.msra.mxu0 0
        %1514 = vmatprep.mubr.bf16.mxu0 0
        %1515 = vmatmul.mubr.bf16.gmra.mxu0 %v1477
        %v1516 = vpop.f32.mrf.mxu0
        %v1517 = vadd.f32 0.0, %v1516
        %v1518 = vpop.f32.mrf.mxu0
        %v1519 = vpop.f32.mrf.mxu0
        %v1520 = vpop.f32.mrf.mxu0
        %1521 = vdwg.mxu0
        %v1522 = vpack.c.bf16 %v1517, %v1469
        %v1524 = vunpack.c.l.b16 %v1522
        %v1525 = vunpack.c.h.b16 %v1522
        %v1526 = vpack.c.b16 %v1524, %v1524
        %v1527 = vpack.c.b16 %v1525, %v1525
        %1528 = vrot.lane.b32.xlu0 %v1526, 16
        %v1529 = vpop.permute.xlu0 %1528
        %1530 = vrot.lane.b32.xlu0 %v1527, 16
        %v1531 = vpop.permute.xlu0 %1530
        %vm1534 = vcmask 191616
        %1535 = vst.msk [vmem:[#allocation3] sm:$0xf] %vm1534, %v1529
        %1536 = vst.msk [vmem:[#allocation3 + $0x4] sm:$0xf] %vm1534, %v1531
        %1537 = vrot.lane.b32.xlu0 %v824, 104
        %v1538 = vpop.permute.xlu0 %1537
        %1539 = vrot.lane.b32.xlu0 %v824, 72
        %v1540 = vpop.permute.xlu0 %1539
        %v1542 = vsel %vm840, %v1538, 0
        %v1545 = vsel %vm840, %v1540, 0
        %1547 = vmatprep.subr.bf16.mxu0 0
        %1548 = vmatpush1.bf16.xpose.msra.mxu0 0
        %1549 = vmatprep.subr.bf16.mxu0 0
        %1550 = vmatpush1.bf16.xpose.msra.mxu0 0
        %1551 = vmatprep.subr.bf16.mxu0 0
        %1552 = vmatpush1.bf16.xpose.msra.mxu0 0
        %1553 = vmatprep.subr.bf16.mxu0 0
        %1554 = vmatpush1.bf16.xpose.msra.mxu0 0
        %1555 = vmatprep.subr.bf16.mxu0 0
        %1556 = vmatpush1.bf16.xpose.msra.mxu0 0
        %1557 = vmatprep.subr.bf16.mxu0 0
        %1558 = vmatpush1.bf16.xpose.msra.mxu0 0
        %1559 = vmatprep.subr.bf16.mxu0 0
        %1560 = vmatpush1.bf16.xpose.msra.mxu0 0
        %1561 = vmatprep.subr.bf16.mxu0 0
        %1562 = vmatpush1.bf16.xpose.msra.mxu0 %v1545
        %1563 = vmatprep.subr.bf16.mxu0 0
        %1564 = vmatpush2.bf16.xpose.msra.mxu0 0
        %1565 = vmatprep.subr.bf16.mxu0 0
        %1566 = vmatpush2.bf16.xpose.msra.mxu0 0
        %1567 = vmatprep.subr.bf16.mxu0 0
        %1568 = vmatpush2.bf16.xpose.msra.mxu0 0
        %1569 = vmatprep.subr.bf16.mxu0 0
        %1570 = vmatpush2.bf16.xpose.msra.mxu0 0
        %1571 = vmatprep.subr.bf16.mxu0 0
        %1572 = vmatpush2.bf16.xpose.msra.mxu0 0
        %1573 = vmatprep.subr.bf16.mxu0 0
        %1574 = vmatpush2.bf16.xpose.msra.mxu0 0
        %1575 = vmatprep.subr.bf16.mxu0 0
        %1576 = vmatpush2.bf16.xpose.msra.mxu0 0
        %1577 = vmatprep.subr.bf16.mxu0 0
        %1578 = vmatpush2.bf16.xpose.msra.mxu0 0
        %1579 = vmatprep.mubr.bf16.mxu0 0
        %1580 = vmatmul.mubr.bf16.gmra.mxu0 %v1542
        %v1581 = vpop.f32.mrf.mxu0
        %v1582 = vadd.f32 %v831, %v1581
        %v1583 = vpop.f32.mrf.mxu0
        %v1584 = vpop.f32.mrf.mxu0
        %v1585 = vpop.f32.mrf.mxu0
        %1586 = vdwg.mxu0
        %1587 = vrot.lane.b32.xlu0 %v825, 104
        %v1588 = vpop.permute.xlu0 %1587
        %1589 = vrot.lane.b32.xlu0 %v825, 72
        %v1590 = vpop.permute.xlu0 %1589
        %v1592 = vsel %vm840, %v1588, 0
        %v1595 = vsel %vm840, %v1590, 0
        %1597 = vmatprep.subr.bf16.mxu0 0
        %1598 = vmatpush1.bf16.xpose.msra.mxu0 0
        %1599 = vmatprep.subr.bf16.mxu0 0
        %1600 = vmatpush1.bf16.xpose.msra.mxu0 0
        %1601 = vmatprep.subr.bf16.mxu0 0
        %1602 = vmatpush1.bf16.xpose.msra.mxu0 0
        %1603 = vmatprep.subr.bf16.mxu0 0
        %1604 = vmatpush1.bf16.xpose.msra.mxu0 0
        %1605 = vmatprep.subr.bf16.mxu0 0
        %1606 = vmatpush1.bf16.xpose.msra.mxu0 0
        %1607 = vmatprep.subr.bf16.mxu0 0
        %1608 = vmatpush1.bf16.xpose.msra.mxu0 0
        %1609 = vmatprep.subr.bf16.mxu0 0
        %1610 = vmatpush1.bf16.xpose.msra.mxu0 0
        %1611 = vmatprep.subr.bf16.mxu0 0
        %1612 = vmatpush1.bf16.xpose.msra.mxu0 %v1595
        %1613 = vmatprep.subr.bf16.mxu0 0
        %1614 = vmatpush2.bf16.xpose.msra.mxu0 0
        %1615 = vmatprep.subr.bf16.mxu0 0
        %1616 = vmatpush2.bf16.xpose.msra.mxu0 0
        %1617 = vmatprep.subr.bf16.mxu0 0
        %1618 = vmatpush2.bf16.xpose.msra.mxu0 0
        %1619 = vmatprep.subr.bf16.mxu0 0
        %1620 = vmatpush2.bf16.xpose.msra.mxu0 0
        %1621 = vmatprep.subr.bf16.mxu0 0
        %1622 = vmatpush2.bf16.xpose.msra.mxu0 0
        %1623 = vmatprep.subr.bf16.mxu0 0
        %1624 = vmatpush2.bf16.xpose.msra.mxu0 0
        %1625 = vmatprep.subr.bf16.mxu0 0
        %1626 = vmatpush2.bf16.xpose.msra.mxu0 0
        %1627 = vmatprep.subr.bf16.mxu0 0
        %1628 = vmatpush2.bf16.xpose.msra.mxu0 0
        %1629 = vmatprep.mubr.bf16.mxu0 0
        %1630 = vmatmul.mubr.bf16.gmra.mxu0 %v1592
        %v1631 = vpop.f32.mrf.mxu0
        %v1632 = vadd.f32 %v835, %v1631
        %v1633 = vpop.f32.mrf.mxu0
        %v1634 = vpop.f32.mrf.mxu0
        %v1635 = vpop.f32.mrf.mxu0
        %1636 = vdwg.mxu0
        %v1637 = vsel %vm840, %v1582, -inf
        %1638 = vmax.xlane.f32.xlu0 %v1637
        %v1639 = vpop.xlane.xlu0 %1638
        %v1640 = vsel %vm840, %v1632, -inf
        %1641 = vmax.xlane.f32.xlu0 %v1640
        %v1642 = vpop.xlane.xlu0 %1641
        %v1643 = vsub.f32 %v1582, %v1639
        %v1644 = vsub.f32 %v1632, %v1642
        %v1645 = vmul.f32 %v1643, 1.442695
        %v1646 = vpow.pop %v1645
        %v1647 = vmul.f32 %v1644, 1.442695
        %v1648 = vpow.pop %v1647
        %v1649 = vsel %vm840, %v1646, 0.0
        %1650 = vadd.xlane.f32.xlu0 %v1649
        %v1651 = vpop.xlane.xlu0 %1650
        %v1652 = vsel %vm840, %v1648, 0.0
        %1653 = vadd.xlane.f32.xlu0 %v1652
        %v1654 = vpop.xlane.xlu0 %1653
        %v1655 = vrcp.pop %v1651
        %v1656 = vrcp.pop %v1654
        %v1657 = vmul.f32 %v1646, %v1655
        %v1658 = vmul.f32 %v1648, %v1656
        %v1659 = vpack.c.bf16 %v1657, %v1657
        %v1660 = vpack.c.bf16 %v1658, %v1658
        %1661 = vrot.lane.b32.xlu0 %v824, 40
        %v1662 = vpop.permute.xlu0 %1661
        %v1664 = vsel %vm840, %v1659, 0
        %v1667 = vsel %vm964, %v1662, 0
        %1669 = vmatprep.subr.bf16.mxu0 0
        %1670 = vmatpush1.bf16.msra.mxu0 0
        %1671 = vmatprep.subr.bf16.mxu0 0
        %1672 = vmatpush1.bf16.msra.mxu0 0
        %1673 = vmatprep.subr.bf16.mxu0 0
        %1674 = vmatpush1.bf16.msra.mxu0 0
        %1675 = vmatprep.subr.bf16.mxu0 0
        %1676 = vmatpush1.bf16.msra.mxu0 0
        %1677 = vmatprep.subr.bf16.mxu0 0
        %1678 = vmatpush1.bf16.msra.mxu0 0
        %1679 = vmatprep.subr.bf16.mxu0 0
        %1680 = vmatpush1.bf16.msra.mxu0 0
        %1681 = vmatprep.subr.bf16.mxu0 0
        %1682 = vmatpush1.bf16.msra.mxu0 0
        %1683 = vmatprep.subr.bf16.mxu0 0
        %1684 = vmatpush1.bf16.msra.mxu0 %v1667
        %1685 = vmatprep.subr.bf16.mxu0 0
        %1686 = vmatpush2.bf16.msra.mxu0 0
        %1687 = vmatprep.subr.bf16.mxu0 0
        %1688 = vmatpush2.bf16.msra.mxu0 0
        %1689 = vmatprep.subr.bf16.mxu0 0
        %1690 = vmatpush2.bf16.msra.mxu0 0
        %1691 = vmatprep.subr.bf16.mxu0 0
        %1692 = vmatpush2.bf16.msra.mxu0 0
        %1693 = vmatprep.subr.bf16.mxu0 0
        %1694 = vmatpush2.bf16.msra.mxu0 0
        %1695 = vmatprep.subr.bf16.mxu0 0
        %1696 = vmatpush2.bf16.msra.mxu0 0
        %1697 = vmatprep.subr.bf16.mxu0 0
        %1698 = vmatpush2.bf16.msra.mxu0 0
        %1699 = vmatprep.subr.bf16.mxu0 0
        %1700 = vmatpush2.bf16.msra.mxu0 0
        %1701 = vmatprep.mubr.bf16.mxu0 0
        %1702 = vmatmul.mubr.bf16.gmra.mxu0 %v1664
        %v1703 = vpop.f32.mrf.mxu0
        %v1704 = vadd.f32 0.0, %v1703
        %v1705 = vpop.f32.mrf.mxu0
        %v1706 = vpop.f32.mrf.mxu0
        %v1707 = vpop.f32.mrf.mxu0
        %1708 = vdwg.mxu0
        %1709 = vrot.lane.b32.xlu0 %v825, 40
        %v1710 = vpop.permute.xlu0 %1709
        %v1712 = vsel %vm840, %v1660, 0
        %v1715 = vsel %vm964, %v1710, 0
        %1717 = vmatprep.subr.bf16.mxu0 0
        %1718 = vmatpush1.bf16.msra.mxu0 0
        %1719 = vmatprep.subr.bf16.mxu0 0
        %1720 = vmatpush1.bf16.msra.mxu0 0
        %1721 = vmatprep.subr.bf16.mxu0 0
        %1722 = vmatpush1.bf16.msra.mxu0 0
        %1723 = vmatprep.subr.bf16.mxu0 0
        %1724 = vmatpush1.bf16.msra.mxu0 0
        %1725 = vmatprep.subr.bf16.mxu0 0
        %1726 = vmatpush1.bf16.msra.mxu0 0
        %1727 = vmatprep.subr.bf16.mxu0 0
        %1728 = vmatpush1.bf16.msra.mxu0 0
        %1729 = vmatprep.subr.bf16.mxu0 0
        %1730 = vmatpush1.bf16.msra.mxu0 0
        %1731 = vmatprep.subr.bf16.mxu0 0
        %1732 = vmatpush1.bf16.msra.mxu0 %v1715
        %1733 = vmatprep.subr.bf16.mxu0 0
        %1734 = vmatpush2.bf16.msra.mxu0 0
        %1735 = vmatprep.subr.bf16.mxu0 0
        %1736 = vmatpush2.bf16.msra.mxu0 0
        %1737 = vmatprep.subr.bf16.mxu0 0
        %1738 = vmatpush2.bf16.msra.mxu0 0
        %1739 = vmatprep.subr.bf16.mxu0 0
        %1740 = vmatpush2.bf16.msra.mxu0 0
        %1741 = vmatprep.subr.bf16.mxu0 0
        %1742 = vmatpush2.bf16.msra.mxu0 0
        %1743 = vmatprep.subr.bf16.mxu0 0
        %1744 = vmatpush2.bf16.msra.mxu0 0
        %1745 = vmatprep.subr.bf16.mxu0 0
        %1746 = vmatpush2.bf16.msra.mxu0 0
        %1747 = vmatprep.subr.bf16.mxu0 0
        %1748 = vmatpush2.bf16.msra.mxu0 0
        %1749 = vmatprep.mubr.bf16.mxu0 0
        %1750 = vmatmul.mubr.bf16.gmra.mxu0 %v1712
        %v1751 = vpop.f32.mrf.mxu0
        %v1752 = vadd.f32 0.0, %v1751
        %v1753 = vpop.f32.mrf.mxu0
        %v1754 = vpop.f32.mrf.mxu0
        %v1755 = vpop.f32.mrf.mxu0
        %1756 = vdwg.mxu0
        %v1757 = vpack.c.bf16 %v1752, %v1704
        %v1759 = vunpack.c.l.b16 %v1757
        %v1760 = vunpack.c.h.b16 %v1757
        %v1761 = vpack.c.b16 %v1759, %v1759
        %v1762 = vpack.c.b16 %v1760, %v1760
        %1763 = vrot.lane.b32.xlu0 %v1761, 24
        %v1764 = vpop.permute.xlu0 %1763
        %1765 = vrot.lane.b32.xlu0 %v1762, 24
        %v1766 = vpop.permute.xlu0 %1765
        %vm1769 = vcmask 257216
        %1770 = vst.msk [vmem:[#allocation3] sm:$0xf] %vm1769, %v1764
        %1771 = vst.msk [vmem:[#allocation3 + $0x4] sm:$0xf] %vm1769, %v1766
        %v1772 = vld [vmem:[#allocation3] sm:$0xf]
        %v1773 = vld [vmem:[#allocation3 + $0x4] sm:$0xf]
        %v1774 = vld [vmem:[%s674] sm:$0xf]
        %v1775 = vld [vmem:[%s674 + $0x4] sm:$0xf]
        %v1776 = vld [vmem:[%s674 + $0x8] sm:$0xf]
        %v1777 = vld [vmem:[%s674 + $0xc] sm:$0xf]
        %v1778 = vlaneseq
        %v1779 = vshrl.u32 %v1778, 7
        %v1780 = vsub.s32 0, %v1779
        %v1781 = vrot.slane %v749, %v1780
        %v1784 = vunpack.c.l.b16 %v1772
        %v1785 = vunpack.c.l.b16 %v1773
        %v1786 = vpack.c.b16 %v1785, %v1784
        %v1791 = vunpack.c.l.b16 %v1774
        %v1792 = vunpack.c.l.b16 %v1775
        %v1793 = vunpack.c.l.b16 %v1776
        %v1794 = vunpack.c.l.b16 %v1777
        %v1795 = vpack.c.b16 %v1792, %v1791
        %v1796 = vpack.c.b16 %v1794, %v1793
        %v1800 = vsel %vm773, %v1786, 0
        %1802 = vmatprep.subr.bf16.mxu0 0
        %1803 = vmatpush1.bf16.msra.mxu0 0
        %1804 = vmatprep.subr.bf16.mxu0 0
        %1805 = vmatpush1.bf16.msra.mxu0 0
        %1806 = vmatprep.subr.bf16.mxu0 0
        %1807 = vmatpush1.bf16.msra.mxu0 0
        %1808 = vmatprep.subr.bf16.mxu0 0
        %1809 = vmatpush1.bf16.msra.mxu0 0
        %1810 = vmatprep.subr.bf16.mxu0 0
        %1811 = vmatpush1.bf16.msra.mxu0 0
        %1812 = vmatprep.subr.bf16.mxu0 0
        %1813 = vmatpush1.bf16.msra.mxu0 0
        %1814 = vmatprep.subr.bf16.mxu0 0
        %1815 = vmatpush1.bf16.msra.mxu0 %v1796
        %1816 = vmatprep.subr.bf16.mxu0 0
        %1817 = vmatpush1.bf16.msra.mxu0 %v1795
        %1818 = vmatprep.subr.bf16.mxu0 0
        %1819 = vmatpush2.bf16.msra.mxu0 0
        %1820 = vmatprep.subr.bf16.mxu0 0
        %1821 = vmatpush2.bf16.msra.mxu0 0
        %1822 = vmatprep.subr.bf16.mxu0 0
        %1823 = vmatpush2.bf16.msra.mxu0 0
        %1824 = vmatprep.subr.bf16.mxu0 0
        %1825 = vmatpush2.bf16.msra.mxu0 0
        %1826 = vmatprep.subr.bf16.mxu0 0
        %1827 = vmatpush2.bf16.msra.mxu0 0
        %1828 = vmatprep.subr.bf16.mxu0 0
        %1829 = vmatpush2.bf16.msra.mxu0 0
        %1830 = vmatprep.subr.bf16.mxu0 0
        %1831 = vmatpush2.bf16.msra.mxu0 0
        %1832 = vmatprep.subr.bf16.mxu0 0
        %1833 = vmatpush2.bf16.msra.mxu0 0
        %1834 = vmatprep.mubr.bf16.mxu0 0
        %1835 = vmatmul.mubr.bf16.gmra.mxu0 %v1800
        %v1836 = vpop.f32.mrf.mxu0
        %v1837 = vadd.f32 %v1781, %v1836
        %v1838 = vpop.f32.mrf.mxu0
        %v1839 = vpop.f32.mrf.mxu0
        %v1840 = vadd.f32 %v1781, %v1839
        %v1841 = vpop.f32.mrf.mxu0
        %1842 = vdwg.mxu0
        %v1843 = vadd.f32 %v1837, %v746
        %v1844 = vadd.f32 %v1840, %v747
        %v1845 = vsel %vm773, %v1843, 0.0
        %1846 = vadd.xlane.f32.xlu0 %v1845
        %v1847 = vpop.xlane.xlu0 %1846
        %v1848 = vsel %vm773, %v1844, 0.0
        %1849 = vadd.xlane.f32.xlu0 %v1848
        %v1850 = vpop.xlane.xlu0 %1849
        %v1851 = vrcp.pop 32.0
        %v1852 = vmul.f32 %v1847, %v1851
        %v1853 = vmul.f32 %v1850, %v1851
        %v1854 = vsub.f32 %v1843, %v1852
        %v1855 = vsub.f32 %v1844, %v1853
        %v1856 = vmul.f32 %v1854, %v1854
        %v1857 = vmul.f32 %v1855, %v1855
        %v1858 = vsel %vm773, %v1856, 0.0
        %1859 = vadd.xlane.f32.xlu0 %v1858
        %v1860 = vpop.xlane.xlu0 %1859
        %v1861 = vsel %vm773, %v1857, 0.0
        %1862 = vadd.xlane.f32.xlu0 %v1861
        %v1863 = vpop.xlane.xlu0 %1862
        %v1864 = vmul.f32 %v1860, %v1851
        %v1865 = vmul.f32 %v1863, %v1851
        %v1866 = vadd.f32 %v1864, 1e-12
        %v1867 = vadd.f32 %v1865, 1e-12
        %v1868 = vrsqrt.pop %v1866
        %v1869 = vrsqrt.pop %v1867
        %v1870 = vmul.f32 %v1854, %v1868
        %v1871 = vmul.f32 %v1855, %v1869
        %v1872 = vlaneseq
        %v1873 = vshrl.u32 %v1872, 7
        %v1874 = vsub.s32 1, %v1873
        %v1875 = vrot.slane %v749, %v1874
        %v1876 = vmul.f32 %v1870, %v1875
        %v1877 = vmul.f32 %v1871, %v1875
        %v1878 = vlaneseq
        %v1879 = vshrl.u32 %v1878, 7
        %v1880 = vsub.s32 2, %v1879
        %v1881 = vrot.slane %v749, %v1880
        %v1882 = vadd.f32 %v1876, %v1881
        %v1883 = vadd.f32 %v1877, %v1881
        %v1884 = vpack.c.bf16 %v1883, %v1882
        %v1885 = vld [vmem:[%s679] sm:$0xf]
        %v1886 = vld [vmem:[%s679 + $0x4] sm:$0xf]
        %v1887 = vld [vmem:[%s679 + $0x8] sm:$0xf]
        %v1888 = vld [vmem:[%s679 + $0xc] sm:$0xf]
        %v1889 = vld [vmem:[%s592] sm:$0x1]
        %v1891 = vlaneseq
        %v1892 = vshrl.u32 %v1891, 7
        %v1893 = vsub.s32 0, %v1892
        %v1894 = vrot.slane %v1889, %v1893
        %v1900 = vunpack.c.l.b16 %v1885
        %v1901 = vunpack.c.l.b16 %v1886
        %v1902 = vunpack.c.l.b16 %v1887
        %v1903 = vunpack.c.l.b16 %v1888
        %v1904 = vpack.c.b16 %v1901, %v1900
        %v1905 = vpack.c.b16 %v1903, %v1902
        %v1909 = vsel %vm773, %v1884, 0
        %1911 = vmatprep.subr.bf16.mxu0 0
        %1912 = vmatpush1.bf16.msra.mxu0 0
        %1913 = vmatprep.subr.bf16.mxu0 0
        %1914 = vmatpush1.bf16.msra.mxu0 0
        %1915 = vmatprep.subr.bf16.mxu0 0
        %1916 = vmatpush1.bf16.msra.mxu0 0
        %1917 = vmatprep.subr.bf16.mxu0 0
        %1918 = vmatpush1.bf16.msra.mxu0 0
        %1919 = vmatprep.subr.bf16.mxu0 0
        %1920 = vmatpush1.bf16.msra.mxu0 0
        %1921 = vmatprep.subr.bf16.mxu0 0
        %1922 = vmatpush1.bf16.msra.mxu0 0
        %1923 = vmatprep.subr.bf16.mxu0 0
        %1924 = vmatpush1.bf16.msra.mxu0 %v1905
        %1925 = vmatprep.subr.bf16.mxu0 0
        %1926 = vmatpush1.bf16.msra.mxu0 %v1904
        %1927 = vmatprep.subr.bf16.mxu0 0
        %1928 = vmatpush2.bf16.msra.mxu0 0
        %1929 = vmatprep.subr.bf16.mxu0 0
        %1930 = vmatpush2.bf16.msra.mxu0 0
        %1931 = vmatprep.subr.bf16.mxu0 0
        %1932 = vmatpush2.bf16.msra.mxu0 0
        %1933 = vmatprep.subr.bf16.mxu0 0
        %1934 = vmatpush2.bf16.msra.mxu0 0
        %1935 = vmatprep.subr.bf16.mxu0 0
        %1936 = vmatpush2.bf16.msra.mxu0 0
        %1937 = vmatprep.subr.bf16.mxu0 0
        %1938 = vmatpush2.bf16.msra.mxu0 0
        %1939 = vmatprep.subr.bf16.mxu0 0
        %1940 = vmatpush2.bf16.msra.mxu0 0
        %1941 = vmatprep.subr.bf16.mxu0 0
        %1942 = vmatpush2.bf16.msra.mxu0 0
        %1943 = vmatprep.mubr.bf16.mxu0 0
        %1944 = vmatmul.mubr.bf16.gmra.mxu0 %v1909
        %v1945 = vpop.f32.mrf.mxu0
        %v1946 = vadd.f32 %v1894, %v1945
        %v1947 = vpop.f32.mrf.mxu0
        %v1948 = vpop.f32.mrf.mxu0
        %v1949 = vadd.f32 %v1894, %v1948
        %v1950 = vpop.f32.mrf.mxu0
        %1951 = vdwg.mxu0
        %v1952 = vmul.f32 %v1946, 0.5
        %v1953 = vmul.f32 %v1949, 0.5
        %v1954 = vmul.f32 %v1946, 0.70710677
        %v1955 = vmul.f32 %v1949, 0.70710677
        %v1956 = verf.f32.pop %v1954
        %v1957 = verf.f32.pop %v1955
        %v1958 = vadd.f32 %v1956, 1.0
        %v1959 = vadd.f32 %v1957, 1.0
        %v1960 = vmul.f32 %v1952, %v1958
        %v1961 = vmul.f32 %v1953, %v1959
        %v1962 = vpack.c.bf16 %v1961, %v1960
        %v1963 = vld [vmem:[%s684] sm:$0xf]
        %v1964 = vld [vmem:[%s684 + $0x4] sm:$0xf]
        %v1965 = vld [vmem:[%s684 + $0x8] sm:$0xf]
        %v1966 = vld [vmem:[%s684 + $0xc] sm:$0xf]
        %v1967 = vld [vmem:[%s684 + $0x10] sm:$0xf]
        %v1968 = vld [vmem:[%s684 + $0x14] sm:$0xf]
        %v1969 = vld [vmem:[%s684 + $0x18] sm:$0xf]
        %v1970 = vld [vmem:[%s684 + $0x1c] sm:$0xf]
        %v1971 = vlaneseq
        %v1972 = vshrl.u32 %v1971, 7
        %v1973 = vsub.s32 3, %v1972
        %v1974 = vrot.slane %v749, %v1973
        %v1983 = vunpack.c.l.b16 %v1963
        %v1984 = vunpack.c.l.b16 %v1964
        %v1985 = vunpack.c.l.b16 %v1965
        %v1986 = vunpack.c.l.b16 %v1966
        %v1987 = vunpack.c.l.b16 %v1967
        %v1988 = vunpack.c.l.b16 %v1968
        %v1989 = vunpack.c.l.b16 %v1969
        %v1990 = vunpack.c.l.b16 %v1970
        %v1991 = vpack.c.b16 %v1984, %v1983
        %v1992 = vpack.c.b16 %v1986, %v1985
        %v1993 = vpack.c.b16 %v1988, %v1987
        %v1994 = vpack.c.b16 %v1990, %v1989
        %vm1999 = vcmask 523264
        %v2001 = vsel %vm1999, %v1962, 0
        %2003 = vmatprep.subr.bf16.mxu0 0
        %2004 = vmatpush1.bf16.msra.mxu0 0
        %2005 = vmatprep.subr.bf16.mxu0 0
        %2006 = vmatpush1.bf16.msra.mxu0 0
        %2007 = vmatprep.subr.bf16.mxu0 0
        %2008 = vmatpush1.bf16.msra.mxu0 0
        %2009 = vmatprep.subr.bf16.mxu0 0
        %2010 = vmatpush1.bf16.msra.mxu0 0
        %2011 = vmatprep.subr.bf16.mxu0 0
        %2012 = vmatpush1.bf16.msra.mxu0 %v1994
        %2013 = vmatprep.subr.bf16.mxu0 0
        %2014 = vmatpush1.bf16.msra.mxu0 %v1993
        %2015 = vmatprep.subr.bf16.mxu0 0
        %2016 = vmatpush1.bf16.msra.mxu0 %v1992
        %2017 = vmatprep.subr.bf16.mxu0 0
        %2018 = vmatpush1.bf16.msra.mxu0 %v1991
        %2019 = vmatprep.subr.bf16.mxu0 0
        %2020 = vmatpush2.bf16.msra.mxu0 0
        %2021 = vmatprep.subr.bf16.mxu0 0
        %2022 = vmatpush2.bf16.msra.mxu0 0
        %2023 = vmatprep.subr.bf16.mxu0 0
        %2024 = vmatpush2.bf16.msra.mxu0 0
        %2025 = vmatprep.subr.bf16.mxu0 0
        %2026 = vmatpush2.bf16.msra.mxu0 0
        %2027 = vmatprep.subr.bf16.mxu0 0
        %2028 = vmatpush2.bf16.msra.mxu0 0
        %2029 = vmatprep.subr.bf16.mxu0 0
        %2030 = vmatpush2.bf16.msra.mxu0 0
        %2031 = vmatprep.subr.bf16.mxu0 0
        %2032 = vmatpush2.bf16.msra.mxu0 0
        %2033 = vmatprep.subr.bf16.mxu0 0
        %2034 = vmatpush2.bf16.msra.mxu0 0
        %2035 = vmatprep.mubr.bf16.mxu0 0
        %2036 = vmatmul.mubr.bf16.gmra.mxu0 %v2001
        %v2037 = vpop.f32.mrf.mxu0
        %v2038 = vadd.f32 %v1974, %v2037
        %v2039 = vpop.f32.mrf.mxu0
        %v2040 = vpop.f32.mrf.mxu0
        %v2041 = vadd.f32 %v1974, %v2040
        %v2042 = vpop.f32.mrf.mxu0
        %2043 = vdwg.mxu0
        %v2044 = vadd.f32 %v2038, %v1882
        %v2045 = vadd.f32 %v2041, %v1883
        %v2046 = vsel %vm773, %v2044, 0.0
        %2047 = vadd.xlane.f32.xlu0 %v2046
        %v2048 = vpop.xlane.xlu0 %2047
        %v2049 = vsel %vm773, %v2045, 0.0
        %2050 = vadd.xlane.f32.xlu0 %v2049
        %v2051 = vpop.xlane.xlu0 %2050
        %v2052 = vmul.f32 %v2048, %v1851
        %v2053 = vmul.f32 %v2051, %v1851
        %v2054 = vsub.f32 %v2044, %v2052
        %v2055 = vsub.f32 %v2045, %v2053
        %v2056 = vmul.f32 %v2054, %v2054
        %v2057 = vmul.f32 %v2055, %v2055
        %v2058 = vsel %vm773, %v2056, 0.0
        %2059 = vadd.xlane.f32.xlu0 %v2058
        %v2060 = vpop.xlane.xlu0 %2059
        %v2061 = vsel %vm773, %v2057, 0.0
        %2062 = vadd.xlane.f32.xlu0 %v2061
        %v2063 = vpop.xlane.xlu0 %2062
        %v2064 = vmul.f32 %v2060, %v1851
        %v2065 = vmul.f32 %v2063, %v1851
        %v2066 = vadd.f32 %v2064, 1e-12
        %v2067 = vadd.f32 %v2065, 1e-12
        %v2068 = vrsqrt.pop %v2066
        %v2069 = vrsqrt.pop %v2067
        %v2070 = vmul.f32 %v2054, %v2068
        %v2071 = vmul.f32 %v2055, %v2069
        %v2072 = vlaneseq
        %v2073 = vshrl.u32 %v2072, 7
        %v2074 = vsub.s32 4, %v2073
        %v2075 = vrot.slane %v749, %v2074
        %v2076 = vmul.f32 %v2070, %v2075
        %v2077 = vmul.f32 %v2071, %v2075
        %v2078 = vlaneseq
        %v2079 = vshrl.u32 %v2078, 7
        %v2080 = vsub.s32 5, %v2079
        %v2081 = vrot.slane %v749, %v2080
        %v2082 = vadd.f32 %v2076, %v2081
        %v2083 = vadd.f32 %v2077, %v2081
        %2084 = vst.msk [vmem:[#allocation2] sm:$0xff] %vm773, %v2082
        %2085 = vst.msk [vmem:[#allocation2 + $0x8] sm:$0xff] %vm773, %v2083
        %p2086 = scmp.eq.s32.totalorder %s30, 1
        // Predicated region
        $region113: #{tpu_custom_call.1} parent=79 // pred_check
          %p2087 = pneg %p2086
        $region114: #{tpu_custom_call.1} parent=79 // pred_check_branch
          %2089 = sbr.rel (%p2087) target = $region116
        $region115: #{tpu_custom_call.1} parent=79 // pred_region
          %v2090 = vpack.c.bf16 %v2082, %v2082
          %v2091 = vpack.c.bf16 %v2083, %v2083
          %v2092 = vld [vmem:[%s11] sm:$0xf]
          %v2093 = vld [vmem:[%s11 + $0x4] sm:$0xf]
          %v2094 = vld [vmem:[%s11 + $0x8] sm:$0xf]
          %v2095 = vld [vmem:[%s11 + $0xc] sm:$0xf]
          %v2096 = vld [vmem:[%s12] sm:$0x1]
          %v2098 = vlaneseq
          %v2099 = vshrl.u32 %v2098, 7
          %v2100 = vsub.s32 0, %v2099
          %v2101 = vrot.slane %v2096, %v2100
          %v2105 = vunpack.c.l.b16 %v2090
          %v2106 = vunpack.c.l.b16 %v2091
          %v2107 = vrot.slane %v2106, 7
          %vm2108 = vcmask 1041409
          %v2109 = vsel %vm2108, %v2107, %v2105
          %v2110 = vpack.c.b16 %v2109, %v2109
          %v2115 = vunpack.c.l.b16 %v2092
          %v2116 = vunpack.c.l.b16 %v2093
          %v2117 = vunpack.c.l.b16 %v2094
          %v2118 = vunpack.c.l.b16 %v2095
          %v2119 = vpack.c.b16 %v2116, %v2115
          %v2120 = vpack.c.b16 %v2118, %v2117
          %v2124 = vsel %vm773, %v2110, 0
          %2126 = vmatprep.subr.bf16.mxu0 0
          %2127 = vmatpush1.bf16.msra.mxu0 0
          %2128 = vmatprep.subr.bf16.mxu0 0
          %2129 = vmatpush1.bf16.msra.mxu0 0
          %2130 = vmatprep.subr.bf16.mxu0 0
          %2131 = vmatpush1.bf16.msra.mxu0 0
          %2132 = vmatprep.subr.bf16.mxu0 0
          %2133 = vmatpush1.bf16.msra.mxu0 0
          %2134 = vmatprep.subr.bf16.mxu0 0
          %2135 = vmatpush1.bf16.msra.mxu0 0
          %2136 = vmatprep.subr.bf16.mxu0 0
          %2137 = vmatpush1.bf16.msra.mxu0 0
          %2138 = vmatprep.subr.bf16.mxu0 0
          %2139 = vmatpush1.bf16.msra.mxu0 %v2120
          %2140 = vmatprep.subr.bf16.mxu0 0
          %2141 = vmatpush1.bf16.msra.mxu0 %v2119
          %2142 = vmatprep.subr.bf16.mxu0 0
          %2143 = vmatpush2.bf16.msra.mxu0 0
          %2144 = vmatprep.subr.bf16.mxu0 0
          %2145 = vmatpush2.bf16.msra.mxu0 0
          %2146 = vmatprep.subr.bf16.mxu0 0
          %2147 = vmatpush2.bf16.msra.mxu0 0
          %2148 = vmatprep.subr.bf16.mxu0 0
          %2149 = vmatpush2.bf16.msra.mxu0 0
          %2150 = vmatprep.subr.bf16.mxu0 0
          %2151 = vmatpush2.bf16.msra.mxu0 0
          %2152 = vmatprep.subr.bf16.mxu0 0
          %2153 = vmatpush2.bf16.msra.mxu0 0
          %2154 = vmatprep.subr.bf16.mxu0 0
          %2155 = vmatpush2.bf16.msra.mxu0 0
          %2156 = vmatprep.subr.bf16.mxu0 0
          %2157 = vmatpush2.bf16.msra.mxu0 0
          %2158 = vmatprep.mubr.bf16.mxu0 0
          %2159 = vmatmul.mubr.bf16.gmra.mxu0 %v2124
          %v2160 = vpop.f32.mrf.mxu0
          %v2161 = vadd.f32 %v2101, %v2160
          %v2162 = vpop.f32.mrf.mxu0
          %v2163 = vpop.f32.mrf.mxu0
          %v2164 = vpop.f32.mrf.mxu0
          %2165 = vdwg.mxu0
          %v2166 = vtanh.pop %v2161
          %v2167 = vpack.c.bf16 %v2166, %v2166
          %v2168 = vld [vmem:[#allocation14] sm:$0xf]
          %v2169 = vld [vmem:[#allocation14 + $0x4] sm:$0xf]
          %v2170 = vld [vmem:[#allocation14 + $0x8] sm:$0xf]
          %v2171 = vld [vmem:[#allocation14 + $0xc] sm:$0xf]
          %v2172 = vld [vmem:[%s14] sm:$0x1]
          %v2174 = vlaneseq
          %v2175 = vshrl.u32 %v2174, 7
          %v2176 = vsub.s32 0, %v2175
          %v2177 = vrot.slane %v2172, %v2176
          %v2183 = vunpack.c.l.b16 %v2168
          %v2184 = vunpack.c.l.b16 %v2169
          %v2185 = vunpack.c.l.b16 %v2170
          %v2186 = vunpack.c.l.b16 %v2171
          %v2187 = vpack.c.b16 %v2184, %v2183
          %v2188 = vpack.c.b16 %v2186, %v2185
          %v2192 = vsel %vm773, %v2167, 0
          %2194 = vmatprep.subr.bf16.mxu0 0
          %2195 = vmatpush1.bf16.msra.mxu0 0
          %2196 = vmatprep.subr.bf16.mxu0 0
          %2197 = vmatpush1.bf16.msra.mxu0 0
          %2198 = vmatprep.subr.bf16.mxu0 0
          %2199 = vmatpush1.bf16.msra.mxu0 0
          %2200 = vmatprep.subr.bf16.mxu0 0
          %2201 = vmatpush1.bf16.msra.mxu0 0
          %2202 = vmatprep.subr.bf16.mxu0 0
          %2203 = vmatpush1.bf16.msra.mxu0 0
          %2204 = vmatprep.subr.bf16.mxu0 0
          %2205 = vmatpush1.bf16.msra.mxu0 0
          %2206 = vmatprep.subr.bf16.mxu0 0
          %2207 = vmatpush1.bf16.msra.mxu0 %v2188
          %2208 = vmatprep.subr.bf16.mxu0 0
          %2209 = vmatpush1.bf16.msra.mxu0 %v2187
          %2210 = vmatprep.subr.bf16.mxu0 0
          %2211 = vmatpush2.bf16.msra.mxu0 0
          %2212 = vmatprep.subr.bf16.mxu0 0
          %2213 = vmatpush2.bf16.msra.mxu0 0
          %2214 = vmatprep.subr.bf16.mxu0 0
          %2215 = vmatpush2.bf16.msra.mxu0 0
          %2216 = vmatprep.subr.bf16.mxu0 0
          %2217 = vmatpush2.bf16.msra.mxu0 0
          %2218 = vmatprep.subr.bf16.mxu0 0
          %2219 = vmatpush2.bf16.msra.mxu0 0
          %2220 = vmatprep.subr.bf16.mxu0 0
          %2221 = vmatpush2.bf16.msra.mxu0 0
          %2222 = vmatprep.subr.bf16.mxu0 0
          %2223 = vmatpush2.bf16.msra.mxu0 0
          %2224 = vmatprep.subr.bf16.mxu0 0
          %2225 = vmatpush2.bf16.msra.mxu0 0
          %2226 = vmatprep.mubr.bf16.mxu0 0
          %2227 = vmatmul.mubr.bf16.gmra.mxu0 %v2192
          %v2228 = vpop.f32.mrf.mxu0
          %v2229 = vadd.f32 %v2177, %v2228
          %v2230 = vpop.f32.mrf.mxu0
          %v2231 = vpop.f32.mrf.mxu0
          %v2232 = vpop.f32.mrf.mxu0
          %2233 = vdwg.mxu0
          %2234 = vst [vmem:[#allocation15] sm:$0x3] %v2229
        $region116: #{tpu_custom_call.1} parent=79 // pred_fallthru
          _
        // Predicated region
        $region117: #{tpu_custom_call.1} parent=79 // pred_check
          %p2235 = pneg %p393
        $region118: #{tpu_custom_call.1} parent=79 // pred_check_branch
          %2237 = sbr.rel (%p2235) target = $region120
        $region119: #{tpu_custom_call.1} parent=79 // pred_region
          %s2239 = ssub.s32 32, 32
          %2240 = vsyncadd [#allocation6], %s2239
          %s2242 = sshll.u32 [#allocation15], 4
          %s2243 = int_to_ptr.vmem [resolvable:$true] %s2242
          %2245 = dma.vmem_to_hbm [thread:$0]  %s2243, 32, %s15, [#allocation6]
        $region120: #{tpu_custom_call.1} parent=79 // pred_fallthru
          _
        // Predicated region
        $region121: #{tpu_custom_call.1} parent=79 // pred_check
          %p2246 = pneg %p393
        $region122: #{tpu_custom_call.1} parent=79 // pred_check_branch
          %2248 = sbr.rel (%p2246) target = $region124
        $region123: #{tpu_custom_call.1} parent=79 // pred_region
          %2249 = dma.done [#allocation6], 32
        $region124: #{tpu_custom_call.1} parent=79 // pred_fallthru
          _
      $region80: #{tpu_custom_call.1} parent=5 // pred_fallthru
        _
      %p2250 = scmp.le.s32.totalorder 2, %s25
      // Predicated region
      $region125: #{tpu_custom_call.1} parent=5 // pred_check
        %p2251 = pneg %p2250
      $region126: #{tpu_custom_call.1} parent=5 // pred_check_branch
        %2253 = sbr.rel (%p2251) target = $region128
      $region127: #{tpu_custom_call.1} parent=5 // pred_region
        %s2254 = ssub.s32 %s25, 2
      $region128: #{tpu_custom_call.1} parent=5 // pred_fallthru
        _
    $region6: #{tpu_custom_call.1} parent=1 // loop_footer
      %s29 = sadd.s32 1, %s25
    $region7: #{tpu_custom_call.1} parent=1 // loop_footer_branch
      %24 = sbr.rel target = $region3
    $region8: #{tpu_custom_call.1} parent=1 // loop_exit
      _
    %2255 = vsyncpa [#allocation5], 1
    %s2256 = scalar_lea.sflag [#allocation5], 1
    %2257 = vsyncpa %s2256, 1
    %2258 = vsyncpa [#allocation8], 1
    %2259 = vsyncpa [#allocation11], 1
    %2260 = vsyncpa [#allocation6], 1
    %s2261 = scalar_lea.sflag [#allocation6], 1
    %2262 = vsyncpa %s2261, 1

</llo_original>
